<compile_context>
chip_gen: v5e
topology: v5e:2x2
jax: 0.10.0
libtpu: 0.0.40
codegen_flags: <defaults>
</compile_context>

<pallas_src>
import functools

import jax
import jax.numpy as jnp
from jax import lax
from jax.experimental import pallas as pl
from jax.experimental.pallas import tpu as pltpu


def _block_kernel(x_ref, w1_ref, b1_ref, wdw_ref, b2_ref, w3_ref, b3_ref,
                  o_ref, *, K, W, E, use_res):
    """Fused InvertedResidual for one batch chunk, lane-dense slab layout.

    x_ref : (Nb, H, W*Cin)   f32   input slab (last dim = lanes)
    w1_ref: (W*Cin, W*E)     f32   BN1-folded expand conv, block-diag over W
    b1_ref: (1, W*E)         f32   BN1 shift, tiled over W
    wdw_ref:(K*K, W*E)       f32   BN2-folded depthwise taps, tiled over W
    b2_ref: (1, W*E)         f32
    w3_ref: (W*E, W*Cout)    f32   BN3-folded project conv, block-diag over W
    b3_ref: (1, W*Cout)      f32
    o_ref : (Nb, H, W*Cout)  f32
    """
    Nb, H, _ = x_ref.shape
    NH = Nb * H
    WE = W * E
    P = K // 2

    # (Nb, H, W*Cin) -> (Nb*H, W*Cin): merge leading dims only (layout no-op).
    x = x_ref[...].reshape(NH, x_ref.shape[2])

    # ---- conv1: 1x1 expand (block-diag matmul) + folded-BN bias + ReLU6 ----
    h1 = jnp.dot(x, w1_ref[...], preferred_element_type=jnp.float32)
    h1 = jnp.clip(h1 + b1_ref[...], 0.0, 6.0)                 # (NH, W*E)

    # ---- conv2: KxK depthwise, stride 1, pad K//2 --------------------------
    # XLU rolls for the spatial shifts + VPU masked FMAs; no padded scratch.
    h_idx = lax.broadcasted_iota(jnp.int32, (NH, 1), 0) % H   # row -> h in image
    c_idx = lax.broadcasted_iota(jnp.int32, (1, WE), 1)       # col -> w*E + e

    acc = jnp.zeros((NH, WE), jnp.float32)
    for dh in range(K):
        oh = dh - P                                           # row (H) offset
        if oh == 0:
            base = h1
        else:
            rolled = pltpu.roll(h1, shift=(-oh) % NH, axis=0)
            valid = (h_idx >= -oh) if oh < 0 else (h_idx < H - oh)
            base = jnp.where(valid, rolled, 0.0)
        for dwi in range(K):
            ow = (dwi - P) * E                                # col (W) offset
            if ow == 0:
                tap = base
            else:
                rolled = pltpu.roll(base, shift=(-ow) % WE, axis=1)
                valid = (c_idx >= -ow) if ow < 0 else (c_idx < WE - ow)
                tap = jnp.where(valid, rolled, 0.0)
            t = dh * K + dwi
            acc = acc + tap * wdw_ref[t:t + 1, :]             # (1, W*E) weights
    dwv = jnp.clip(acc + b2_ref[...], 0.0, 6.0)               # (NH, W*E)

    # ---- conv3: 1x1 project (block-diag matmul) + folded-BN bias -----------
    h3 = jnp.dot(dwv, w3_ref[...], preferred_element_type=jnp.float32)
    h3 = h3 + b3_ref[...]                                     # (NH, W*Cout)

    # ---- identity residual (stride==1 and inp==oup) ------------------------
    if use_res:
        h3 = h3 + x.astype(jnp.float32)

    # (NH, W*Cout) -> (Nb, H, W*Cout): split leading dim (layout no-op),
    # lane-dense (128-wide) stores.
    o_ref[...] = h3.reshape(o_ref.shape).astype(o_ref.dtype)


def inverted_residual(x_nhwc, params, *, inp, oup, hidden, stride=1, K=3,
                      batch_block=None):
    """Run the fused block. x_nhwc: (N, H, W, Cin) float32."""
    if stride != 1:
        raise NotImplementedError("TODO(synk): stride=2 path not wired up.")
    N, H, W, Cin = x_nhwc.shape
    assert Cin == inp
    use_res = (stride == 1) and (inp == oup)

    Nb = N if batch_block is None else batch_block
    assert N % Nb == 0

    # Lane-dense input slab: (N, H, W*Cin) (free reshape; memory is contiguous).
    x_in = x_nhwc.reshape(N, H, W * Cin)

    weight_names = ["w1", "b1", "wdw", "b2", "w3", "b3"]
    weights = [params[k] for k in weight_names]

    def full_spec(a):
        nd = a.ndim
        return pl.BlockSpec(a.shape, lambda n, _nd=nd: (0,) * _nd)

    kernel = functools.partial(_block_kernel, K=K, W=W, E=hidden,
                               use_res=use_res)
    out = pl.pallas_call(
        kernel,
        out_shape=jax.ShapeDtypeStruct((N, H, W * oup), jnp.float32),
        grid_spec=pltpu.PrefetchScalarGridSpec(
            num_scalar_prefetch=0,
            grid=(N // Nb,),
            in_specs=[pl.BlockSpec((Nb, H, W * Cin), lambda n: (n, 0, 0))]
                     + [full_spec(a) for a in weights],
            out_specs=pl.BlockSpec((Nb, H, W * oup), lambda n: (n, 0, 0)),
        ),
        compiler_params=pltpu.CompilerParams(
            dimension_semantics=("parallel",),
            vmem_limit_bytes=32 * 1024 * 1024),
    )(x_in, *weights)
    return out.reshape(N, H, W, oup)


# ----------------------------- parameter prep --------------------------------

def _bn_fold(p, eps=1e-5):
    gamma, beta, mean, var = p
    scale = gamma / jnp.sqrt(var + eps)
    return scale, beta - mean * scale


def prepare_params(raw, W):
    """One-time constant fold: BN into conv weights, block-diag/tile over W."""
    Cin, E = raw["w1"].shape
    _, Cout = raw["w3"].shape
    s1, t1 = _bn_fold(raw["bn1"])
    s2, t2 = _bn_fold(raw["bn2"])
    s3, t3 = _bn_fold(raw["bn3"])

    eye = jnp.eye(W, dtype=jnp.float32)
    w1f = raw["w1"] * s1[None, :]                    # (Cin, E)
    w3f = raw["w3"] * s3[None, :]                    # (E, Cout)
    wdwf = raw["wdw"] * s2[None, :]                  # (K*K, E)

    return {
        # block-diagonal over W: row u*Cin+c, col v*E+e -> eye[u,v]*w1f[c,e]
        "w1": jnp.einsum("uv,ce->ucve", eye, w1f).reshape(W * Cin, W * E),
        "b1": jnp.tile(t1, W).reshape(1, W * E),
        "wdw": jnp.tile(wdwf, (1, W)),               # (K*K, W*E)
        "b2": jnp.tile(t2, W).reshape(1, W * E),
        "w3": jnp.einsum("uv,eo->uevo", eye, w3f).reshape(W * E, W * Cout),
        "b3": jnp.tile(t3, W).reshape(1, W * Cout),
    }


# ----------------------------- pure-JAX reference ----------------------------

def _reference_block(x_nhwc, raw, *, K=3, stride=1):
    """Mirrors the PyTorch forward (expand_ratio != 1 branch, eval-mode BN)."""
    def bn(y, p, eps=1e-5):
        g, b, m, v = p
        return (y - m) / jnp.sqrt(v + eps) * g + b

    h = jnp.einsum("nhwc,ce->nhwe", x_nhwc, raw["w1"])
    h = jnp.clip(bn(h, raw["bn1"]), 0.0, 6.0)
    wdw = raw["wdw"].reshape(K, K, 1, -1)            # HWIO, groups = E
    h = lax.conv_general_dilated(
        h, wdw, window_strides=(stride, stride),
        padding=((K // 2,) * 2, (K // 2,) * 2),
        dimension_numbers=("NHWC", "HWIO", "NHWC"),
        feature_group_count=h.shape[-1])
    h = jnp.clip(bn(h, raw["bn2"]), 0.0, 6.0)
    h = jnp.einsum("nhwe,eo->nhwo", h, raw["w3"])
    h = bn(h, raw["bn3"])
    if stride == 1 and x_nhwc.shape[-1] == h.shape[-1]:
        h = h + x_nhwc
    return h


def _init_params(key, Cin, E, Cout, K):
    ks = jax.random.split(key, 6)

    def bn_params(k, C):
        k1, k2, k3, k4 = jax.random.split(k, 4)
        gamma = jax.random.uniform(k1, (C,), jnp.float32, 0.5, 1.5)
        beta = jax.random.normal(k2, (C,), jnp.float32) * 0.1
        mean = jax.random.normal(k3, (C,), jnp.float32) * 0.1
        var = jax.random.uniform(k4, (C,), jnp.float32, 0.5, 1.5)
        return (gamma, beta, mean, var)

    return {
        "w1": jax.random.normal(ks[0], (Cin, E), jnp.float32) * 0.3,
        "wdw": jax.random.normal(ks[1], (K * K, E), jnp.float32) * 0.3,
        "w3": jax.random.normal(ks[2], (E, Cout), jnp.float32) * 0.3,
        "bn1": bn_params(ks[3], E),
        "bn2": bn_params(ks[4], E),
        "bn3": bn_params(ks[5], Cout),
    }


if __name__ == "__main__":
    # InvertedResidual(inp=8, oup=8, stride=1, expand_ratio=4)
    #   -> hidden=32, use_res_connect=True, expand_ratio != 1 branch.
    N, H, W = 2, 16, 16
    inp, oup, stride, expand_ratio = 8, 8, 1, 4
    hidden = int(round(inp * expand_ratio))          # 32
    K = 3

    key = jax.random.PRNGKey(0)
    kx, kp = jax.random.split(key)
    x_nchw = jax.random.normal(kx, (N, inp, H, W), jnp.float32)
    x_nhwc = jnp.transpose(x_nchw, (0, 2, 3, 1))     # NCHW -> NHWC

    raw = _init_params(kp, inp, hidden, oup, K)
    params = prepare_params(raw, W)

    out = inverted_residual(x_nhwc, params, inp=inp, oup=oup, hidden=hidden,
                            stride=stride, K=K)
    out = jax.block_until_ready(out)

    ref = jax.block_until_ready(
        _reference_block(x_nhwc, raw, K=K, stride=stride))
    assert out.shape == (N, H, W, oup)
    err = float(jnp.max(jnp.abs(out - ref)))
    assert jnp.allclose(out, ref, atol=1e-4, rtol=1e-4), err

    print("KERNEL_OK")
</pallas_src>

<mosaic_0001>
module attributes {stable_mosaic.version = 11 : i64} {
  func.func @_block_kernel(%arg0: i32, %arg1: memref<2x16x128xf32, #tpu.memory_space<vmem>>, %arg2: memref<128x512xf32, #tpu.memory_space<vmem>>, %arg3: memref<1x512xf32, #tpu.memory_space<vmem>>, %arg4: memref<9x512xf32, #tpu.memory_space<vmem>>, %arg5: memref<1x512xf32, #tpu.memory_space<vmem>>, %arg6: memref<512x128xf32, #tpu.memory_space<vmem>>, %arg7: memref<1x128xf32, #tpu.memory_space<vmem>>, %arg8: memref<2x16x128xf32, #tpu.memory_space<vmem>>) attributes {dimension_semantics = [#tpu.dimension_semantics<parallel>], iteration_bounds = array<i64: 1>, scalar_prefetch = 0 : i64, scratch_operands = 0 : i64, tpu.core_type = #tpu.core_type<tc>, window_params = [{transform_indices = @transform_0, window_bounds = array<i64: 2, 16, 128>}, {pipeline_mode = #tpu.pipeline_mode<synchronous>, transform_indices = @transform_1, window_bounds = array<i64: 128, 512>}, {pipeline_mode = #tpu.pipeline_mode<synchronous>, transform_indices = @transform_2, window_bounds = array<i64: 1, 512>}, {pipeline_mode = #tpu.pipeline_mode<synchronous>, transform_indices = @transform_3, window_bounds = array<i64: 9, 512>}, {pipeline_mode = #tpu.pipeline_mode<synchronous>, transform_indices = @transform_4, window_bounds = array<i64: 1, 512>}, {pipeline_mode = #tpu.pipeline_mode<synchronous>, transform_indices = @transform_5, window_bounds = array<i64: 512, 128>}, {pipeline_mode = #tpu.pipeline_mode<synchronous>, transform_indices = @transform_6, window_bounds = array<i64: 1, 128>}, {transform_indices = @transform_7, window_bounds = array<i64: 2, 16, 128>}]} {
    %c0 = arith.constant 0 : index
    %c0_0 = arith.constant 0 : index
    %c0_1 = arith.constant 0 : index
    %0 = vector.load %arg1[%c0, %c0_0, %c0_1] : memref<2x16x128xf32, #tpu.memory_space<vmem>>, vector<2x16x128xf32>
    %1 = vector.shape_cast %0 : vector<2x16x128xf32> to vector<32x128xf32>
    %c0_2 = arith.constant 0 : index
    %c0_3 = arith.constant 0 : index
    %2 = vector.load %arg2[%c0_2, %c0_3] : memref<128x512xf32, #tpu.memory_space<vmem>>, vector<128x512xf32>
    %cst = arith.constant dense<0.000000e+00> : vector<32x512xf32>
    %3 = tpu.matmul %1, %2, %cst {dimension_numbers = #tpu.dot_dimension_numbers<[1], [0], [0], [1], [0, 0, 1, 1], [], []>} : vector<32x128xf32>, vector<128x512xf32>, vector<32x512xf32> -> vector<32x512xf32>
    %c0_4 = arith.constant 0 : index
    %c0_5 = arith.constant 0 : index
    %4 = vector.load %arg3[%c0_4, %c0_5] : memref<1x512xf32, #tpu.memory_space<vmem>>, vector<1x512xf32>
    %5 = vector.broadcast %4 : vector<1x512xf32> to vector<32x512xf32>
    %6 = arith.addf %3, %5 : vector<32x512xf32>
    %cst_6 = arith.constant 0.000000e+00 : f32
    %cst_7 = arith.constant 6.000000e+00 : f32
    %7 = vector.broadcast %cst_6 : f32 to vector<32x512xf32>
    %8 = arith.maximumf %7, %6 : vector<32x512xf32>
    %9 = vector.broadcast %cst_7 : f32 to vector<32x512xf32>
    %10 = arith.minimumf %9, %8 : vector<32x512xf32>
    %11 = tpu.iota {dimensions = array<i32: 0>} : vector<32x1xi32>
    %c16_i32 = arith.constant 16 : i32
    %c0_i32 = arith.constant 0 : i32
    %12 = arith.cmpi eq, %c16_i32, %c0_i32 : i32
    %c1_i32 = arith.constant 1 : i32
    %13 = arith.select %12, %c1_i32, %c16_i32 : i32
    %14 = vector.broadcast %13 : i32 to vector<32x1xi32>
    %15 = arith.remsi %11, %14 : vector<32x1xi32>
    %c0_i32_8 = arith.constant 0 : i32
    %16 = vector.broadcast %c0_i32_8 : i32 to vector<32x1xi32>
    %17 = arith.cmpi ne, %15, %16 : vector<32x1xi32>
    %c0_i32_9 = arith.constant 0 : i32
    %18 = vector.broadcast %c0_i32_9 : i32 to vector<32x1xi32>
    %19 = arith.cmpi slt, %15, %18 : vector<32x1xi32>
    %c0_i32_10 = arith.constant 0 : i32
    %20 = arith.cmpi slt, %13, %c0_i32_10 : i32
    %21 = vector.broadcast %20 : i1 to vector<32x1xi1>
    %22 = vector.broadcast %21 : vector<32x1xi1> to vector<32x1xi1>
    %23 = arith.xori %19, %22 : vector<32x1xi1>
    %24 = arith.andi %23, %17 : vector<32x1xi1>
    %25 = vector.broadcast %13 : i32 to vector<32x1xi32>
    %26 = arith.addi %15, %25 : vector<32x1xi32>
    %27 = arith.select %24, %26, %15 : vector<32x1xi1>, vector<32x1xi32>
    %28 = tpu.iota {dimensions = array<i32: 1>} : vector<1x512xi32>
    %cst_11 = arith.constant 0.000000e+00 : f32
    %29 = vector.broadcast %cst_11 : f32 to vector<32x512xf32>
    %c1_i32_12 = arith.constant 1 : i32
    %30 = tpu.dynamic_rotate %10 by %c1_i32_12 dim 0 : vector<32x512xf32>, i32 -> vector<32x512xf32>
    %c1_i32_13 = arith.constant 1 : i32
    %31 = vector.broadcast %c1_i32_13 : i32 to vector<32x1xi32>
    %32 = arith.cmpi sge, %27, %31 : vector<32x1xi32>
    %cst_14 = arith.constant 0.000000e+00 : f32
    %33 = vector.shape_cast %32 : vector<32x1xi1> to vector<32x1xi1>
    %34 = vector.broadcast %33 : vector<32x1xi1> to vector<32x512xi1>
    %35 = vector.broadcast %cst_14 : f32 to vector<32x512xf32>
    %36 = arith.select %34, %30, %35 : vector<32x512xi1>, vector<32x512xf32>
    %c32_i32 = arith.constant 32 : i32
    %37 = tpu.dynamic_rotate %36 by %c32_i32 dim 1 : vector<32x512xf32>, i32 -> vector<32x512xf32>
    %c32_i32_15 = arith.constant 32 : i32
    %38 = vector.broadcast %c32_i32_15 : i32 to vector<1x512xi32>
    %39 = arith.cmpi sge, %28, %38 : vector<1x512xi32>
    %cst_16 = arith.constant 0.000000e+00 : f32
    %40 = vector.shape_cast %39 : vector<1x512xi1> to vector<1x512xi1>
    %41 = vector.broadcast %40 : vector<1x512xi1> to vector<32x512xi1>
    %42 = vector.broadcast %cst_16 : f32 to vector<32x512xf32>
    %43 = arith.select %41, %37, %42 : vector<32x512xi1>, vector<32x512xf32>
    %c0_17 = arith.constant 0 : index
    %c0_18 = arith.constant 0 : index
    %44 = vector.load %arg4[%c0_17, %c0_18] : memref<9x512xf32, #tpu.memory_space<vmem>>, vector<1x512xf32>
    %45 = vector.broadcast %44 : vector<1x512xf32> to vector<32x512xf32>
    %46 = arith.mulf %43, %45 : vector<32x512xf32>
    %47 = arith.addf %29, %46 : vector<32x512xf32>
    %c1 = arith.constant 1 : index
    %c0_19 = arith.constant 0 : index
    %48 = vector.load %arg4[%c1, %c0_19] : memref<9x512xf32, #tpu.memory_space<vmem>>, vector<1x512xf32>
    %49 = vector.broadcast %48 : vector<1x512xf32> to vector<32x512xf32>
    %50 = arith.mulf %36, %49 : vector<32x512xf32>
    %51 = arith.addf %47, %50 : vector<32x512xf32>
    %c480_i32 = arith.constant 480 : i32
    %52 = tpu.dynamic_rotate %36 by %c480_i32 dim 1 : vector<32x512xf32>, i32 -> vector<32x512xf32>
    %c480_i32_20 = arith.constant 480 : i32
    %53 = vector.broadcast %c480_i32_20 : i32 to vector<1x512xi32>
    %54 = arith.cmpi slt, %28, %53 : vector<1x512xi32>
    %cst_21 = arith.constant 0.000000e+00 : f32
    %55 = vector.shape_cast %54 : vector<1x512xi1> to vector<1x512xi1>
    %56 = vector.broadcast %55 : vector<1x512xi1> to vector<32x512xi1>
    %57 = vector.broadcast %cst_21 : f32 to vector<32x512xf32>
    %58 = arith.select %56, %52, %57 : vector<32x512xi1>, vector<32x512xf32>
    %c2 = arith.constant 2 : index
    %c0_22 = arith.constant 0 : index
    %59 = vector.load %arg4[%c2, %c0_22] : memref<9x512xf32, #tpu.memory_space<vmem>>, vector<1x512xf32>
    %60 = vector.broadcast %59 : vector<1x512xf32> to vector<32x512xf32>
    %61 = arith.mulf %58, %60 : vector<32x512xf32>
    %62 = arith.addf %51, %61 : vector<32x512xf32>
    %c32_i32_23 = arith.constant 32 : i32
    %63 = tpu.dynamic_rotate %10 by %c32_i32_23 dim 1 : vector<32x512xf32>, i32 -> vector<32x512xf32>
    %c32_i32_24 = arith.constant 32 : i32
    %64 = vector.broadcast %c32_i32_24 : i32 to vector<1x512xi32>
    %65 = arith.cmpi sge, %28, %64 : vector<1x512xi32>
    %cst_25 = arith.constant 0.000000e+00 : f32
    %66 = vector.shape_cast %65 : vector<1x512xi1> to vector<1x512xi1>
    %67 = vector.broadcast %66 : vector<1x512xi1> to vector<32x512xi1>
    %68 = vector.broadcast %cst_25 : f32 to vector<32x512xf32>
    %69 = arith.select %67, %63, %68 : vector<32x512xi1>, vector<32x512xf32>
    %c3 = arith.constant 3 : index
    %c0_26 = arith.constant 0 : index
    %70 = vector.load %arg4[%c3, %c0_26] : memref<9x512xf32, #tpu.memory_space<vmem>>, vector<1x512xf32>
    %71 = vector.broadcast %70 : vector<1x512xf32> to vector<32x512xf32>
    %72 = arith.mulf %69, %71 : vector<32x512xf32>
    %73 = arith.addf %62, %72 : vector<32x512xf32>
    %c4 = arith.constant 4 : index
    %c0_27 = arith.constant 0 : index
    %74 = vector.load %arg4[%c4, %c0_27] : memref<9x512xf32, #tpu.memory_space<vmem>>, vector<1x512xf32>
    %75 = vector.broadcast %74 : vector<1x512xf32> to vector<32x512xf32>
    %76 = arith.mulf %10, %75 : vector<32x512xf32>
    %77 = arith.addf %73, %76 : vector<32x512xf32>
    %c480_i32_28 = arith.constant 480 : i32
    %78 = tpu.dynamic_rotate %10 by %c480_i32_28 dim 1 : vector<32x512xf32>, i32 -> vector<32x512xf32>
    %c480_i32_29 = arith.constant 480 : i32
    %79 = vector.broadcast %c480_i32_29 : i32 to vector<1x512xi32>
    %80 = arith.cmpi slt, %28, %79 : vector<1x512xi32>
    %cst_30 = arith.constant 0.000000e+00 : f32
    %81 = vector.shape_cast %80 : vector<1x512xi1> to vector<1x512xi1>
    %82 = vector.broadcast %81 : vector<1x512xi1> to vector<32x512xi1>
    %83 = vector.broadcast %cst_30 : f32 to vector<32x512xf32>
    %84 = arith.select %82, %78, %83 : vector<32x512xi1>, vector<32x512xf32>
    %c5 = arith.constant 5 : index
    %c0_31 = arith.constant 0 : index
    %85 = vector.load %arg4[%c5, %c0_31] : memref<9x512xf32, #tpu.memory_space<vmem>>, vector<1x512xf32>
    %86 = vector.broadcast %85 : vector<1x512xf32> to vector<32x512xf32>
    %87 = arith.mulf %84, %86 : vector<32x512xf32>
    %88 = arith.addf %77, %87 : vector<32x512xf32>
    %c31_i32 = arith.constant 31 : i32
    %89 = tpu.dynamic_rotate %10 by %c31_i32 dim 0 : vector<32x512xf32>, i32 -> vector<32x512xf32>
    %c15_i32 = arith.constant 15 : i32
    %90 = vector.broadcast %c15_i32 : i32 to vector<32x1xi32>
    %91 = arith.cmpi slt, %27, %90 : vector<32x1xi32>
    %cst_32 = arith.constant 0.000000e+00 : f32
    %92 = vector.shape_cast %91 : vector<32x1xi1> to vector<32x1xi1>
    %93 = vector.broadcast %92 : vector<32x1xi1> to vector<32x512xi1>
    %94 = vector.broadcast %cst_32 : f32 to vector<32x512xf32>
    %95 = arith.select %93, %89, %94 : vector<32x512xi1>, vector<32x512xf32>
    %c32_i32_33 = arith.constant 32 : i32
    %96 = tpu.dynamic_rotate %95 by %c32_i32_33 dim 1 : vector<32x512xf32>, i32 -> vector<32x512xf32>
    %c32_i32_34 = arith.constant 32 : i32
    %97 = vector.broadcast %c32_i32_34 : i32 to vector<1x512xi32>
    %98 = arith.cmpi sge, %28, %97 : vector<1x512xi32>
    %cst_35 = arith.constant 0.000000e+00 : f32
    %99 = vector.shape_cast %98 : vector<1x512xi1> to vector<1x512xi1>
    %100 = vector.broadcast %99 : vector<1x512xi1> to vector<32x512xi1>
    %101 = vector.broadcast %cst_35 : f32 to vector<32x512xf32>
    %102 = arith.select %100, %96, %101 : vector<32x512xi1>, vector<32x512xf32>
    %c6 = arith.constant 6 : index
    %c0_36 = arith.constant 0 : index
    %103 = vector.load %arg4[%c6, %c0_36] : memref<9x512xf32, #tpu.memory_space<vmem>>, vector<1x512xf32>
    %104 = vector.broadcast %103 : vector<1x512xf32> to vector<32x512xf32>
    %105 = arith.mulf %102, %104 : vector<32x512xf32>
    %106 = arith.addf %88, %105 : vector<32x512xf32>
    %c7 = arith.constant 7 : index
    %c0_37 = arith.constant 0 : index
    %107 = vector.load %arg4[%c7, %c0_37] : memref<9x512xf32, #tpu.memory_space<vmem>>, vector<1x512xf32>
    %108 = vector.broadcast %107 : vector<1x512xf32> to vector<32x512xf32>
    %109 = arith.mulf %95, %108 : vector<32x512xf32>
    %110 = arith.addf %106, %109 : vector<32x512xf32>
    %c480_i32_38 = arith.constant 480 : i32
    %111 = tpu.dynamic_rotate %95 by %c480_i32_38 dim 1 : vector<32x512xf32>, i32 -> vector<32x512xf32>
    %c480_i32_39 = arith.constant 480 : i32
    %112 = vector.broadcast %c480_i32_39 : i32 to vector<1x512xi32>
    %113 = arith.cmpi slt, %28, %112 : vector<1x512xi32>
    %cst_40 = arith.constant 0.000000e+00 : f32
    %114 = vector.shape_cast %113 : vector<1x512xi1> to vector<1x512xi1>
    %115 = vector.broadcast %114 : vector<1x512xi1> to vector<32x512xi1>
    %116 = vector.broadcast %cst_40 : f32 to vector<32x512xf32>
    %117 = arith.select %115, %111, %116 : vector<32x512xi1>, vector<32x512xf32>
    %c8 = arith.constant 8 : index
    %c0_41 = arith.constant 0 : index
    %118 = vector.load %arg4[%c8, %c0_41] : memref<9x512xf32, #tpu.memory_space<vmem>>, vector<1x512xf32>
    %119 = vector.broadcast %118 : vector<1x512xf32> to vector<32x512xf32>
    %120 = arith.mulf %117, %119 : vector<32x512xf32>
    %121 = arith.addf %110, %120 : vector<32x512xf32>
    %c0_42 = arith.constant 0 : index
    %c0_43 = arith.constant 0 : index
    %122 = vector.load %arg5[%c0_42, %c0_43] : memref<1x512xf32, #tpu.memory_space<vmem>>, vector<1x512xf32>
    %123 = vector.broadcast %122 : vector<1x512xf32> to vector<32x512xf32>
    %124 = arith.addf %121, %123 : vector<32x512xf32>
    %cst_44 = arith.constant 0.000000e+00 : f32
    %cst_45 = arith.constant 6.000000e+00 : f32
    %125 = vector.broadcast %cst_44 : f32 to vector<32x512xf32>
    %126 = arith.maximumf %125, %124 : vector<32x512xf32>
    %127 = vector.broadcast %cst_45 : f32 to vector<32x512xf32>
    %128 = arith.minimumf %127, %126 : vector<32x512xf32>
    %c0_46 = arith.constant 0 : index
    %c0_47 = arith.constant 0 : index
    %129 = vector.load %arg6[%c0_46, %c0_47] : memref<512x128xf32, #tpu.memory_space<vmem>>, vector<512x128xf32>
    %cst_48 = arith.constant dense<0.000000e+00> : vector<32x128xf32>
    %130 = tpu.matmul %128, %129, %cst_48 {dimension_numbers = #tpu.dot_dimension_numbers<[1], [0], [0], [1], [0, 0, 1, 1], [], []>} : vector<32x512xf32>, vector<512x128xf32>, vector<32x128xf32> -> vector<32x128xf32>
    %c0_49 = arith.constant 0 : index
    %c0_50 = arith.constant 0 : index
    %131 = vector.load %arg7[%c0_49, %c0_50] : memref<1x128xf32, #tpu.memory_space<vmem>>, vector<1x128xf32>
    %132 = vector.broadcast %131 : vector<1x128xf32> to vector<32x128xf32>
    %133 = arith.addf %130, %132 : vector<32x128xf32>
    %134 = arith.addf %133, %1 : vector<32x128xf32>
    %135 = vector.shape_cast %134 : vector<32x128xf32> to vector<2x16x128xf32>
    %c0_51 = arith.constant 0 : index
    %c0_52 = arith.constant 0 : index
    %c0_53 = arith.constant 0 : index
    %136 = vector.load %arg8[%c0_51, %c0_52, %c0_53] : memref<2x16x128xf32, #tpu.memory_space<vmem>>, vector<2x16x128xf32>
    tpu.vector_store %arg8[%c0_51, %c0_52, %c0_53], %135 {strides = array<i32>} : memref<2x16x128xf32, #tpu.memory_space<vmem>>, vector<2x16x128xf32>,
    return
  }
  func.func @transform_0(%arg0: i32) -> (i32, i32, i32) {
    %c0_i32 = arith.constant 0 : i32
    %c0_i32_0 = arith.constant 0 : i32
    %c0_i32_1 = arith.constant 0 : i32
    return %arg0, %c0_i32, %c0_i32_0 : i32, i32, i32
  }
  func.func @transform_1(%arg0: i32) -> (i32, i32) {
    %c0_i32 = arith.constant 0 : i32
    %c0_i32_0 = arith.constant 0 : i32
    %c0_i32_1 = arith.constant 0 : i32
    return %c0_i32, %c0_i32_0 : i32, i32
  }
  func.func @transform_2(%arg0: i32) -> (i32, i32) {
    %c0_i32 = arith.constant 0 : i32
    %c0_i32_0 = arith.constant 0 : i32
    %c0_i32_1 = arith.constant 0 : i32
    return %c0_i32, %c0_i32_0 : i32, i32
  }
  func.func @transform_3(%arg0: i32) -> (i32, i32) {
    %c0_i32 = arith.constant 0 : i32
    %c0_i32_0 = arith.constant 0 : i32
    %c0_i32_1 = arith.constant 0 : i32
    return %c0_i32, %c0_i32_0 : i32, i32
  }
  func.func @transform_4(%arg0: i32) -> (i32, i32) {
    %c0_i32 = arith.constant 0 : i32
    %c0_i32_0 = arith.constant 0 : i32
    %c0_i32_1 = arith.constant 0 : i32
    return %c0_i32, %c0_i32_0 : i32, i32
  }
  func.func @transform_5(%arg0: i32) -> (i32, i32) {
    %c0_i32 = arith.constant 0 : i32
    %c0_i32_0 = arith.constant 0 : i32
    %c0_i32_1 = arith.constant 0 : i32
    return %c0_i32, %c0_i32_0 : i32, i32
  }
  func.func @transform_6(%arg0: i32) -> (i32, i32) {
    %c0_i32 = arith.constant 0 : i32
    %c0_i32_0 = arith.constant 0 : i32
    %c0_i32_1 = arith.constant 0 : i32
    return %c0_i32, %c0_i32_0 : i32, i32
  }
  func.func @transform_7(%arg0: i32) -> (i32, i32, i32) {
    %c0_i32 = arith.constant 0 : i32
    %c0_i32_0 = arith.constant 0 : i32
    %c0_i32_1 = arith.constant 0 : i32
    return %arg0, %c0_i32, %c0_i32_0 : i32, i32, i32
  }
}

</mosaic_0001>

<llo_original>
// kernel: tpu_custom_call.1
$region0: #{tpu_custom_call.1}
  #allocation0 [shape = 'u32[]', space=smem, size = 0x4, offset = 0x4, fixed_abs, tag = 'smem constant byte address 0x4 - core index']
  #allocation1 [shape = 'u32[72,128]{1,0:T(1,128)}', space=vmem, size = 0x9000, scoped, tag = 'internal scratch']
  %s0 = inlined_call_operand.hbm [shape: f32[2,16,128], index: 0, kind: input, shape index: {}]
  %s1 = inlined_call_operand.hbm [shape: f32[128,512], index: 1, kind: input, shape index: {}]
  %s2 = inlined_call_operand.hbm [shape: f32[1,512], index: 2, kind: input, shape index: {}]
  %s3 = inlined_call_operand.hbm [shape: f32[9,512], index: 3, kind: input, shape index: {}]
  %s4 = inlined_call_operand.hbm [shape: f32[1,512], index: 4, kind: input, shape index: {}]
  %s5 = inlined_call_operand.hbm [shape: f32[512,128], index: 5, kind: input, shape index: {}]
  %s6 = inlined_call_operand.vmem [shape: f32[1,128], index: 6, kind: input, shape index: {}]
  %s7 = inlined_call_operand.hbm [shape: f32[2,16,128], index: 7, kind: output, shape index: {}]
  %s8 = sld [smem:[#allocation0]]
  $region62: #{tpu_custom_call.1} parent=0
    _
  %s10 = ssub.s32 1, %s8
  %s11 = scalar_select 0, %s10, %s8
  $region1: #{tpu_custom_call.1} parent=0
    #allocation2 [shape = 'u8[16384]{0}', space=vmem, size = 0x4000, scoped, tag = 'input window, operand 0, single buffered']
    #allocation3 [shape = 's32[1]{0}', space=sflag, size = 0x4, scoped, tag = 'scoped memory for tpu_custom_call.1']
    #allocation4 [shape = 's32[1]{0}', space=sflag, size = 0x4, scoped, tag = 'scoped memory for tpu_custom_call.1']
    #allocation5 [shape = 'u8[262144]{0}', space=vmem, size = 0x40000, scoped, tag = 'input window, operand 1, single buffered']
    #allocation6 [shape = 's32[1]{0}', space=sflag, size = 0x4, scoped, tag = 'scoped memory for tpu_custom_call.1']
    #allocation7 [shape = 'u8[2048]{0}', space=vmem, size = 0x800, scoped, tag = 'input window, operand 2, single buffered']
    #allocation8 [shape = 'u8[32768]{0}', space=vmem, size = 0x8000, scoped, tag = 'input window, operand 3, single buffered']
    #allocation9 [shape = 's32[1]{0}', space=sflag, size = 0x4, scoped, tag = 'scoped memory for tpu_custom_call.1']
    #allocation10 [shape = 'u8[2048]{0}', space=vmem, size = 0x800, scoped, tag = 'input window, operand 4, single buffered']
    #allocation11 [shape = 'u8[262144]{0}', space=vmem, size = 0x40000, scoped, tag = 'input window, operand 5, single buffered']
    #allocation12 [shape = 's32[1]{0}', space=sflag, size = 0x4, scoped, tag = 'scoped memory for tpu_custom_call.1']
    #allocation13 [shape = 'u8[16384]{0}', space=vmem, size = 0x4000, scoped, tag = 'output window, operand 0, single buffered']
    %12 = vsyncpa [#allocation3], 0
    %13 = vsyncpa [#allocation6], 0
    %14 = vsyncpa [#allocation9], 0
    %15 = vsyncpa [#allocation12], 0
    %16 = vsyncpa [#allocation4], 0
    // Predicated region
    $region2: #{tpu_custom_call.1} parent=1 // pred_check
      _
    $region3: #{tpu_custom_call.1} parent=1 // pred_check_branch
      %18 = sbr.rel (0) target = $region5
    $region4: #{tpu_custom_call.1} parent=1 // pred_region
      %20 = vsyncadd [#allocation3], 0
      %s21 = sshll.u32 %s0, 4
      %s22 = int_to_ptr.hbm [resolvable:$true] %s21
      %s23 = sshll.u32 [#allocation2], 4
      %s24 = int_to_ptr.vmem [resolvable:$true] %s23
      %29 = dma.hbm_to_vmem [thread:$0]  %s22, 512, %s24, [#allocation3], 128, 128, 8
    $region5: #{tpu_custom_call.1} parent=1 // pred_fallthru
      _
    // Predicated region
    $region6: #{tpu_custom_call.1} parent=1 // pred_check
      _
    $region7: #{tpu_custom_call.1} parent=1 // pred_check_branch
      %31 = sbr.rel (0) target = $region9
    $region8: #{tpu_custom_call.1} parent=1 // pred_region
      %33 = vsyncadd [#allocation6], 0
      %s34 = sshll.u32 %s1, 4
      %s35 = int_to_ptr.hbm [resolvable:$true] %s34
      %s36 = sshll.u32 [#allocation5], 4
      %s37 = int_to_ptr.vmem [resolvable:$true] %s36
      %42 = dma.hbm_to_vmem [thread:$0]  %s35, 8192, %s37, [#allocation6], 512, 512, 32
    $region9: #{tpu_custom_call.1} parent=1 // pred_fallthru
      _
    // Predicated region
    $region10: #{tpu_custom_call.1} parent=1 // pred_check
      _
    $region11: #{tpu_custom_call.1} parent=1 // pred_check_branch
      %44 = sbr.rel (0) target = $region13
    $region12: #{tpu_custom_call.1} parent=1 // pred_region
      %46 = vsyncadd [#allocation6], 0
      %s48 = sshll.u32 %s2, 4
      %s49 = int_to_ptr.hbm [resolvable:$true] %s48
      %s50 = sshll.u32 [#allocation7], 4
      %s51 = int_to_ptr.vmem [resolvable:$true] %s50
      %53 = dma.hbm_to_vmem [thread:$0]  %s49, 64, %s51, [#allocation6]
    $region13: #{tpu_custom_call.1} parent=1 // pred_fallthru
      _
    // Predicated region
    $region14: #{tpu_custom_call.1} parent=1 // pred_check
      _
    $region15: #{tpu_custom_call.1} parent=1 // pred_check_branch
      %55 = sbr.rel (0) target = $region17
    $region16: #{tpu_custom_call.1} parent=1 // pred_region
      %57 = vsyncadd [#allocation9], 0
      %s58 = sshll.u32 %s3, 4
      %s59 = int_to_ptr.hbm [resolvable:$true] %s58
      %s60 = sshll.u32 [#allocation8], 4
      %s61 = int_to_ptr.vmem [resolvable:$true] %s60
      %66 = dma.hbm_to_vmem [thread:$0]  %s59, 1024, %s61, [#allocation9], 512, 512, 32
    $region17: #{tpu_custom_call.1} parent=1 // pred_fallthru
      _
    // Predicated region
    $region18: #{tpu_custom_call.1} parent=1 // pred_check
      _
    $region19: #{tpu_custom_call.1} parent=1 // pred_check_branch
      %68 = sbr.rel (0) target = $region21
    $region20: #{tpu_custom_call.1} parent=1 // pred_region
      %70 = vsyncadd [#allocation9], 0
      %s72 = sshll.u32 %s4, 4
      %s73 = int_to_ptr.hbm [resolvable:$true] %s72
      %s74 = sshll.u32 [#allocation10], 4
      %s75 = int_to_ptr.vmem [resolvable:$true] %s74
      %77 = dma.hbm_to_vmem [thread:$0]  %s73, 64, %s75, [#allocation9]
    $region21: #{tpu_custom_call.1} parent=1 // pred_fallthru
      _
    // Predicated region
    $region22: #{tpu_custom_call.1} parent=1 // pred_check
      _
    $region23: #{tpu_custom_call.1} parent=1 // pred_check_branch
      %79 = sbr.rel (0) target = $region25
    $region24: #{tpu_custom_call.1} parent=1 // pred_region
      %81 = vsyncadd [#allocation12], 0
      %s82 = sshll.u32 %s5, 4
      %s83 = int_to_ptr.hbm [resolvable:$true] %s82
      %s84 = sshll.u32 [#allocation11], 4
      %s85 = int_to_ptr.vmem [resolvable:$true] %s84
      %90 = dma.hbm_to_vmem [thread:$0]  %s83, 8192, %s85, [#allocation12], 128, 128, 8
    $region25: #{tpu_custom_call.1} parent=1 // pred_fallthru
      _
    // Predicated region
    $region26: #{tpu_custom_call.1} parent=1 // pred_check
      _
    $region27: #{tpu_custom_call.1} parent=1 // pred_check_branch
      %92 = sbr.rel (0) target = $region29
    $region28: #{tpu_custom_call.1} parent=1 // pred_region
      _
    $region29: #{tpu_custom_call.1} parent=1 // pred_fallthru
      _
    // Predicated region
    $region30: #{tpu_custom_call.1} parent=1 // pred_check
      _
    $region31: #{tpu_custom_call.1} parent=1 // pred_check_branch
      %94 = sbr.rel (0) target = $region33
    $region32: #{tpu_custom_call.1} parent=1 // pred_region
      %96 = dma.done [#allocation3], 512
    $region33: #{tpu_custom_call.1} parent=1 // pred_fallthru
      _
    // Predicated region
    $region34: #{tpu_custom_call.1} parent=1 // pred_check
      _
    $region35: #{tpu_custom_call.1} parent=1 // pred_check_branch
      %98 = sbr.rel (0) target = $region37
    $region36: #{tpu_custom_call.1} parent=1 // pred_region
      %100 = dma.done [#allocation6], 8192
    $region37: #{tpu_custom_call.1} parent=1 // pred_fallthru
      _
    // Predicated region
    $region38: #{tpu_custom_call.1} parent=1 // pred_check
      _
    $region39: #{tpu_custom_call.1} parent=1 // pred_check_branch
      %102 = sbr.rel (0) target = $region41
    $region40: #{tpu_custom_call.1} parent=1 // pred_region
      %104 = dma.done [#allocation6], 64
    $region41: #{tpu_custom_call.1} parent=1 // pred_fallthru
      _
    // Predicated region
    $region42: #{tpu_custom_call.1} parent=1 // pred_check
      _
    $region43: #{tpu_custom_call.1} parent=1 // pred_check_branch
      %106 = sbr.rel (0) target = $region45
    $region44: #{tpu_custom_call.1} parent=1 // pred_region
      %108 = dma.done [#allocation9], 1024
    $region45: #{tpu_custom_call.1} parent=1 // pred_fallthru
      _
    // Predicated region
    $region46: #{tpu_custom_call.1} parent=1 // pred_check
      _
    $region47: #{tpu_custom_call.1} parent=1 // pred_check_branch
      %110 = sbr.rel (0) target = $region49
    $region48: #{tpu_custom_call.1} parent=1 // pred_region
      %112 = dma.done [#allocation9], 64
    $region49: #{tpu_custom_call.1} parent=1 // pred_fallthru
      _
    // Predicated region
    $region50: #{tpu_custom_call.1} parent=1 // pred_check
      _
    $region51: #{tpu_custom_call.1} parent=1 // pred_check_branch
      %114 = sbr.rel (0) target = $region53
    $region52: #{tpu_custom_call.1} parent=1 // pred_region
      %116 = dma.done [#allocation12], 8192
    $region53: #{tpu_custom_call.1} parent=1 // pred_fallthru
      _
    %v117 = vld [vmem:[#allocation2] sm:$0xff]
    %v118 = vld [vmem:[#allocation2 + $0x8] sm:$0xff]
    %v119 = vld [vmem:[#allocation2 + $0x10] sm:$0xff]
    %v120 = vld [vmem:[#allocation2 + $0x18] sm:$0xff]
    %v121 = vld [vmem:[#allocation5] sm:$0xff]
    %v122 = vld [vmem:[#allocation5 + $0x8] sm:$0xff]
    %v123 = vld [vmem:[#allocation5 + $0x10] sm:$0xff]
    %v124 = vld [vmem:[#allocation5 + $0x18] sm:$0xff]
    %v125 = vld [vmem:[#allocation5 + $0x20] sm:$0xff]
    %v126 = vld [vmem:[#allocation5 + $0x28] sm:$0xff]
    %v127 = vld [vmem:[#allocation5 + $0x30] sm:$0xff]
    %v128 = vld [vmem:[#allocation5 + $0x38] sm:$0xff]
    %v129 = vld [vmem:[#allocation5 + $0x40] sm:$0xff]
    %v130 = vld [vmem:[#allocation5 + $0x48] sm:$0xff]
    %v131 = vld [vmem:[#allocation5 + $0x50] sm:$0xff]
    %v132 = vld [vmem:[#allocation5 + $0x58] sm:$0xff]
    %v133 = vld [vmem:[#allocation5 + $0x60] sm:$0xff]
    %v134 = vld [vmem:[#allocation5 + $0x68] sm:$0xff]
    %v135 = vld [vmem:[#allocation5 + $0x70] sm:$0xff]
    %v136 = vld [vmem:[#allocation5 + $0x78] sm:$0xff]
    %v137 = vld [vmem:[#allocation5 + $0x80] sm:$0xff]
    %v138 = vld [vmem:[#allocation5 + $0x88] sm:$0xff]
    %v139 = vld [vmem:[#allocation5 + $0x90] sm:$0xff]
    %v140 = vld [vmem:[#allocation5 + $0x98] sm:$0xff]
    %v141 = vld [vmem:[#allocation5 + $0xa0] sm:$0xff]
    %v142 = vld [vmem:[#allocation5 + $0xa8] sm:$0xff]
    %v143 = vld [vmem:[#allocation5 + $0xb0] sm:$0xff]
    %v144 = vld [vmem:[#allocation5 + $0xb8] sm:$0xff]
    %v145 = vld [vmem:[#allocation5 + $0xc0] sm:$0xff]
    %v146 = vld [vmem:[#allocation5 + $0xc8] sm:$0xff]
    %v147 = vld [vmem:[#allocation5 + $0xd0] sm:$0xff]
    %v148 = vld [vmem:[#allocation5 + $0xd8] sm:$0xff]
    %v149 = vld [vmem:[#allocation5 + $0xe0] sm:$0xff]
    %v150 = vld [vmem:[#allocation5 + $0xe8] sm:$0xff]
    %v151 = vld [vmem:[#allocation5 + $0xf0] sm:$0xff]
    %v152 = vld [vmem:[#allocation5 + $0xf8] sm:$0xff]
    %v153 = vld [vmem:[#allocation5 + $0x100] sm:$0xff]
    %v154 = vld [vmem:[#allocation5 + $0x108] sm:$0xff]
    %v155 = vld [vmem:[#allocation5 + $0x110] sm:$0xff]
    %v156 = vld [vmem:[#allocation5 + $0x118] sm:$0xff]
    %v157 = vld [vmem:[#allocation5 + $0x120] sm:$0xff]
    %v158 = vld [vmem:[#allocation5 + $0x128] sm:$0xff]
    %v159 = vld [vmem:[#allocation5 + $0x130] sm:$0xff]
    %v160 = vld [vmem:[#allocation5 + $0x138] sm:$0xff]
    %v161 = vld [vmem:[#allocation5 + $0x140] sm:$0xff]
    %v162 = vld [vmem:[#allocation5 + $0x148] sm:$0xff]
    %v163 = vld [vmem:[#allocation5 + $0x150] sm:$0xff]
    %v164 = vld [vmem:[#allocation5 + $0x158] sm:$0xff]
    %v165 = vld [vmem:[#allocation5 + $0x160] sm:$0xff]
    %v166 = vld [vmem:[#allocation5 + $0x168] sm:$0xff]
    %v167 = vld [vmem:[#allocation5 + $0x170] sm:$0xff]
    %v168 = vld [vmem:[#allocation5 + $0x178] sm:$0xff]
    %v169 = vld [vmem:[#allocation5 + $0x180] sm:$0xff]
    %v170 = vld [vmem:[#allocation5 + $0x188] sm:$0xff]
    %v171 = vld [vmem:[#allocation5 + $0x190] sm:$0xff]
    %v172 = vld [vmem:[#allocation5 + $0x198] sm:$0xff]
    %v173 = vld [vmem:[#allocation5 + $0x1a0] sm:$0xff]
    %v174 = vld [vmem:[#allocation5 + $0x1a8] sm:$0xff]
    %v175 = vld [vmem:[#allocation5 + $0x1b0] sm:$0xff]
    %v176 = vld [vmem:[#allocation5 + $0x1b8] sm:$0xff]
    %v177 = vld [vmem:[#allocation5 + $0x1c0] sm:$0xff]
    %v178 = vld [vmem:[#allocation5 + $0x1c8] sm:$0xff]
    %v179 = vld [vmem:[#allocation5 + $0x1d0] sm:$0xff]
    %v180 = vld [vmem:[#allocation5 + $0x1d8] sm:$0xff]
    %v181 = vld [vmem:[#allocation5 + $0x1e0] sm:$0xff]
    %v182 = vld [vmem:[#allocation5 + $0x1e8] sm:$0xff]
    %v183 = vld [vmem:[#allocation5 + $0x1f0] sm:$0xff]
    %v184 = vld [vmem:[#allocation5 + $0x1f8] sm:$0xff]
    %v185 = vld [vmem:[#allocation7] sm:$0xf]
    %v187 = vperm.slane %v185, 0
    %v188 = vperm.slane %v185, 1
    %v189 = vperm.slane %v185, 2
    %v190 = vperm.slane %v185, 3
    %195 = vmatpush.msra.mxu0 %v181
    %196 = vmatpush.msra.mxu0 %v177
    %197 = vmatpush.msra.mxu0 %v173
    %198 = vmatpush.msra.mxu0 %v169
    %199 = vmatpush.msra.mxu0 %v165
    %200 = vmatpush.msra.mxu0 %v161
    %201 = vmatpush.msra.mxu0 %v157
    %202 = vmatpush.msra.mxu0 %v153
    %203 = vmatpush.msra.mxu0 %v149
    %204 = vmatpush.msra.mxu0 %v145
    %205 = vmatpush.msra.mxu0 %v141
    %206 = vmatpush.msra.mxu0 %v137
    %207 = vmatpush.msra.mxu0 %v133
    %208 = vmatpush.msra.mxu0 %v129
    %209 = vmatpush.msra.mxu0 %v125
    %210 = vmatpush.msra.mxu0 %v121
    %211 = vmatmul.f32.gmra.mxu0 %v117
    %v212 = vpop.f32.mrf.mxu0
    %v213 = vadd.f32 %v187, %v212
    %214 = vmatmul.f32.gmra.mxu0 %v118
    %v215 = vpop.f32.mrf.mxu0
    %v216 = vadd.f32 %v187, %v215
    %217 = vmatmul.f32.gmra.mxu0 %v119
    %v218 = vpop.f32.mrf.mxu0
    %v219 = vadd.f32 %v187, %v218
    %220 = vmatmul.f32.gmra.mxu0 %v120
    %v221 = vpop.f32.mrf.mxu0
    %v222 = vadd.f32 %v187, %v221
    %223 = vdwg.mxu0
    %224 = vmatpush.msra.mxu0 %v182
    %225 = vmatpush.msra.mxu0 %v178
    %226 = vmatpush.msra.mxu0 %v174
    %227 = vmatpush.msra.mxu0 %v170
    %228 = vmatpush.msra.mxu0 %v166
    %229 = vmatpush.msra.mxu0 %v162
    %230 = vmatpush.msra.mxu0 %v158
    %231 = vmatpush.msra.mxu0 %v154
    %232 = vmatpush.msra.mxu0 %v150
    %233 = vmatpush.msra.mxu0 %v146
    %234 = vmatpush.msra.mxu0 %v142
    %235 = vmatpush.msra.mxu0 %v138
    %236 = vmatpush.msra.mxu0 %v134
    %237 = vmatpush.msra.mxu0 %v130
    %238 = vmatpush.msra.mxu0 %v126
    %239 = vmatpush.msra.mxu0 %v122
    %240 = vmatmul.f32.gmra.mxu0 %v117
    %v241 = vpop.f32.mrf.mxu0
    %v242 = vadd.f32 %v188, %v241
    %243 = vmatmul.f32.gmra.mxu0 %v118
    %v244 = vpop.f32.mrf.mxu0
    %v245 = vadd.f32 %v188, %v244
    %246 = vmatmul.f32.gmra.mxu0 %v119
    %v247 = vpop.f32.mrf.mxu0
    %v248 = vadd.f32 %v188, %v247
    %249 = vmatmul.f32.gmra.mxu0 %v120
    %v250 = vpop.f32.mrf.mxu0
    %v251 = vadd.f32 %v188, %v250
    %252 = vdwg.mxu0
    %253 = vmatpush.msra.mxu0 %v183
    %254 = vmatpush.msra.mxu0 %v179
    %255 = vmatpush.msra.mxu0 %v175
    %256 = vmatpush.msra.mxu0 %v171
    %257 = vmatpush.msra.mxu0 %v167
    %258 = vmatpush.msra.mxu0 %v163
    %259 = vmatpush.msra.mxu0 %v159
    %260 = vmatpush.msra.mxu0 %v155
    %261 = vmatpush.msra.mxu0 %v151
    %262 = vmatpush.msra.mxu0 %v147
    %263 = vmatpush.msra.mxu0 %v143
    %264 = vmatpush.msra.mxu0 %v139
    %265 = vmatpush.msra.mxu0 %v135
    %266 = vmatpush.msra.mxu0 %v131
    %267 = vmatpush.msra.mxu0 %v127
    %268 = vmatpush.msra.mxu0 %v123
    %269 = vmatmul.f32.gmra.mxu0 %v117
    %v270 = vpop.f32.mrf.mxu0
    %v271 = vadd.f32 %v189, %v270
    %272 = vmatmul.f32.gmra.mxu0 %v118
    %v273 = vpop.f32.mrf.mxu0
    %v274 = vadd.f32 %v189, %v273
    %275 = vmatmul.f32.gmra.mxu0 %v119
    %v276 = vpop.f32.mrf.mxu0
    %v277 = vadd.f32 %v189, %v276
    %278 = vmatmul.f32.gmra.mxu0 %v120
    %v279 = vpop.f32.mrf.mxu0
    %v280 = vadd.f32 %v189, %v279
    %281 = vdwg.mxu0
    %282 = vmatpush.msra.mxu0 %v184
    %283 = vmatpush.msra.mxu0 %v180
    %284 = vmatpush.msra.mxu0 %v176
    %285 = vmatpush.msra.mxu0 %v172
    %286 = vmatpush.msra.mxu0 %v168
    %287 = vmatpush.msra.mxu0 %v164
    %288 = vmatpush.msra.mxu0 %v160
    %289 = vmatpush.msra.mxu0 %v156
    %290 = vmatpush.msra.mxu0 %v152
    %291 = vmatpush.msra.mxu0 %v148
    %292 = vmatpush.msra.mxu0 %v144
    %293 = vmatpush.msra.mxu0 %v140
    %294 = vmatpush.msra.mxu0 %v136
    %295 = vmatpush.msra.mxu0 %v132
    %296 = vmatpush.msra.mxu0 %v128
    %297 = vmatpush.msra.mxu0 %v124
    %298 = vmatmul.f32.gmra.mxu0 %v117
    %v299 = vpop.f32.mrf.mxu0
    %v300 = vadd.f32 %v190, %v299
    %301 = vmatmul.f32.gmra.mxu0 %v118
    %v302 = vpop.f32.mrf.mxu0
    %v303 = vadd.f32 %v190, %v302
    %304 = vmatmul.f32.gmra.mxu0 %v119
    %v305 = vpop.f32.mrf.mxu0
    %v306 = vadd.f32 %v190, %v305
    %307 = vmatmul.f32.gmra.mxu0 %v120
    %v308 = vpop.f32.mrf.mxu0
    %v309 = vadd.f32 %v190, %v308
    %310 = vdwg.mxu0
    %v311 = vmax.f32 %v213, 0.0
    %v312 = vmax.f32 %v242, 0.0
    %v313 = vmax.f32 %v271, 0.0
    %v314 = vmax.f32 %v300, 0.0
    %v315 = vmax.f32 %v216, 0.0
    %v316 = vmax.f32 %v245, 0.0
    %v317 = vmax.f32 %v274, 0.0
    %v318 = vmax.f32 %v303, 0.0
    %v319 = vmax.f32 %v219, 0.0
    %v320 = vmax.f32 %v248, 0.0
    %v321 = vmax.f32 %v277, 0.0
    %v322 = vmax.f32 %v306, 0.0
    %v323 = vmax.f32 %v222, 0.0
    %v324 = vmax.f32 %v251, 0.0
    %v325 = vmax.f32 %v280, 0.0
    %v326 = vmax.f32 %v309, 0.0
    %v327 = vmin.f32 %v311, 6.0
    %v328 = vmin.f32 %v312, 6.0
    %v329 = vmin.f32 %v313, 6.0
    %v330 = vmin.f32 %v314, 6.0
    %v331 = vmin.f32 %v315, 6.0
    %v332 = vmin.f32 %v316, 6.0
    %v333 = vmin.f32 %v317, 6.0
    %v334 = vmin.f32 %v318, 6.0
    %v335 = vmin.f32 %v319, 6.0
    %v336 = vmin.f32 %v320, 6.0
    %v337 = vmin.f32 %v321, 6.0
    %v338 = vmin.f32 %v322, 6.0
    %v339 = vmin.f32 %v323, 6.0
    %v340 = vmin.f32 %v324, 6.0
    %v341 = vmin.f32 %v325, 6.0
    %v342 = vmin.f32 %v326, 6.0
    %v343 = vlaneseq
    %v344 = vshrl.u32 %v343, 7
    %v345 = vadd.s32 %v344, 8
    %v346 = vadd.s32 %v344, 16
    %v347 = vadd.s32 %v344, 24
    %vm348 = vcmp.lt.s32.totalorder %v344, 0
    %v349 = vsub.s32 0, %v344
    %v350 = vsel %vm348, %v349, %v344
    %v351 = vshrl.u32 %v350, 4
    %v352 = vand.u32 %v350, 15
    %v353 = vsub.s32 0, %v352
    %v354 = vsel %vm348, %v353, %v352
    %vm355 = vcmp.lt.s32.totalorder %v345, 0
    %v356 = vsub.s32 0, %v345
    %v357 = vsel %vm355, %v356, %v345
    %v358 = vshrl.u32 %v357, 4
    %v359 = vand.u32 %v357, 15
    %v360 = vsub.s32 0, %v359
    %v361 = vsel %vm355, %v360, %v359
    %vm362 = vcmp.lt.s32.totalorder %v346, 0
    %v363 = vsub.s32 0, %v346
    %v364 = vsel %vm362, %v363, %v346
    %v365 = vshrl.u32 %v364, 4
    %v366 = vand.u32 %v364, 15
    %v367 = vsub.s32 0, %v366
    %v368 = vsel %vm362, %v367, %v366
    %vm369 = vcmp.lt.s32.totalorder %v347, 0
    %v370 = vsub.s32 0, %v347
    %v371 = vsel %vm369, %v370, %v347
    %v372 = vshrl.u32 %v371, 4
    %v373 = vand.u32 %v371, 15
    %v374 = vsub.s32 0, %v373
    %v375 = vsel %vm369, %v374, %v373
    %vm376 = vcmp.ne.s32.totalorder %v354, 0
    %vm377 = vcmp.ne.s32.totalorder %v361, 0
    %vm378 = vcmp.ne.s32.totalorder %v368, 0
    %vm379 = vcmp.ne.s32.totalorder %v375, 0
    %vm380 = vcmp.lt.s32.totalorder %v354, 0
    %vm381 = vcmp.lt.s32.totalorder %v361, 0
    %vm382 = vcmp.lt.s32.totalorder %v368, 0
    %vm383 = vcmp.lt.s32.totalorder %v375, 0
    %vm384 = vmand %vm380, %vm376
    %vm385 = vmand %vm381, %vm377
    %vm386 = vmand %vm382, %vm378
    %vm387 = vmand %vm383, %vm379
    %v388 = vadd.s32 %v354, 16
    %v389 = vadd.s32 %v361, 16
    %v390 = vadd.s32 %v368, 16
    %v391 = vadd.s32 %v375, 16
    %v392 = vsel %vm384, %v388, %v354
    %v393 = vsel %vm385, %v389, %v361
    %v394 = vsel %vm386, %v390, %v368
    %v395 = vsel %vm387, %v391, %v375
    %v396 = vlaneseq
    %v397 = vand.u32 %v396, 127
    %v398 = vadd.s32 %v397, 128
    %v399 = vadd.s32 %v397, 256
    %v400 = vadd.s32 %v397, 384
    %v401 = vrot.slane %v327, 7
    %v402 = vrot.slane %v328, 7
    %v403 = vrot.slane %v329, 7
    %v404 = vrot.slane %v330, 7
    %v405 = vrot.slane %v331, 7
    %v406 = vrot.slane %v332, 7
    %v407 = vrot.slane %v333, 7
    %v408 = vrot.slane %v334, 7
    %v409 = vrot.slane %v335, 7
    %v410 = vrot.slane %v336, 7
    %v411 = vrot.slane %v337, 7
    %v412 = vrot.slane %v338, 7
    %v413 = vrot.slane %v339, 7
    %v414 = vrot.slane %v340, 7
    %v415 = vrot.slane %v341, 7
    %v416 = vrot.slane %v342, 7
    %vm417 = vcmp.lt.s32.totalorder %v344, 1
    %v418 = vsel %vm417, %v409, %v413
    %v419 = vsel %vm417, %v410, %v414
    %v420 = vsel %vm417, %v411, %v415
    %v421 = vsel %vm417, %v412, %v416
    %v422 = vsel %vm417, %v405, %v409
    %v423 = vsel %vm417, %v406, %v410
    %v424 = vsel %vm417, %v407, %v411
    %v425 = vsel %vm417, %v408, %v412
    %v426 = vsel %vm417, %v401, %v405
    %v427 = vsel %vm417, %v402, %v406
    %v428 = vsel %vm417, %v403, %v407
    %v429 = vsel %vm417, %v404, %v408
    %v430 = vsel %vm417, %v413, %v401
    %v431 = vsel %vm417, %v414, %v402
    %v432 = vsel %vm417, %v415, %v403
    %v433 = vsel %vm417, %v416, %v404
    %vm434 = vcmp.ge.s32.totalorder %v392, 1
    %vm435 = vcmp.ge.s32.totalorder %v393, 1
    %vm436 = vcmp.ge.s32.totalorder %v394, 1
    %vm437 = vcmp.ge.s32.totalorder %v395, 1
    %v438 = vsel %vm434, 1, 0
    %v439 = vsel %vm435, 1, 0
    %v440 = vsel %vm436, 1, 0
    %v441 = vsel %vm437, 1, 0
    %vm442 = vcmp.eq.s32.totalorder %v438, 1
    %vm443 = vcmp.eq.s32.totalorder %v439, 1
    %vm444 = vcmp.eq.s32.totalorder %v440, 1
    %vm445 = vcmp.eq.s32.totalorder %v441, 1
    %v446 = vsel %vm442, %v430, 0.0
    %v447 = vsel %vm442, %v431, 0.0
    %v448 = vsel %vm442, %v432, 0.0
    %v449 = vsel %vm442, %v433, 0.0
    %v450 = vsel %vm443, %v426, 0.0
    %v451 = vsel %vm443, %v427, 0.0
    %v452 = vsel %vm443, %v428, 0.0
    %v453 = vsel %vm443, %v429, 0.0
    %v454 = vsel %vm444, %v422, 0.0
    %v455 = vsel %vm444, %v423, 0.0
    %v456 = vsel %vm444, %v424, 0.0
    %v457 = vsel %vm444, %v425, 0.0
    %v458 = vsel %vm445, %v418, 0.0
    %v459 = vsel %vm445, %v419, 0.0
    %v460 = vsel %vm445, %v420, 0.0
    %v461 = vsel %vm445, %v421, 0.0
    %462 = vrot.lane.b32.xlu0 %v446, 32
    %v463 = vpop.permute.xlu0 %462
    %464 = vrot.lane.b32.xlu0 %v450, 32
    %v465 = vpop.permute.xlu0 %464
    %466 = vrot.lane.b32.xlu0 %v454, 32
    %v467 = vpop.permute.xlu0 %466
    %468 = vrot.lane.b32.xlu0 %v458, 32
    %v469 = vpop.permute.xlu0 %468
    %470 = vrot.lane.b32.xlu0 %v447, 32
    %v471 = vpop.permute.xlu0 %470
    %472 = vrot.lane.b32.xlu0 %v451, 32
    %v473 = vpop.permute.xlu0 %472
    %474 = vrot.lane.b32.xlu0 %v455, 32
    %v475 = vpop.permute.xlu0 %474
    %476 = vrot.lane.b32.xlu0 %v459, 32
    %v477 = vpop.permute.xlu0 %476
    %478 = vrot.lane.b32.xlu0 %v448, 32
    %v479 = vpop.permute.xlu0 %478
    %480 = vrot.lane.b32.xlu0 %v452, 32
    %v481 = vpop.permute.xlu0 %480
    %482 = vrot.lane.b32.xlu0 %v456, 32
    %v483 = vpop.permute.xlu0 %482
    %484 = vrot.lane.b32.xlu0 %v460, 32
    %v485 = vpop.permute.xlu0 %484
    %486 = vrot.lane.b32.xlu0 %v449, 32
    %v487 = vpop.permute.xlu0 %486
    %488 = vrot.lane.b32.xlu0 %v453, 32
    %v489 = vpop.permute.xlu0 %488
    %490 = vrot.lane.b32.xlu0 %v457, 32
    %v491 = vpop.permute.xlu0 %490
    %492 = vrot.lane.b32.xlu0 %v461, 32
    %v493 = vpop.permute.xlu0 %492
    %vm494 = vcmp.lt.s32.totalorder %v397, 32
    %v495 = vsel %vm494, %v479, %v487
    %v496 = vsel %vm494, %v481, %v489
    %v497 = vsel %vm494, %v483, %v491
    %v498 = vsel %vm494, %v485, %v493
    %v499 = vsel %vm494, %v471, %v479
    %v500 = vsel %vm494, %v473, %v481
    %v501 = vsel %vm494, %v475, %v483
    %v502 = vsel %vm494, %v477, %v485
    %v503 = vsel %vm494, %v463, %v471
    %v504 = vsel %vm494, %v465, %v473
    %v505 = vsel %vm494, %v467, %v475
    %v506 = vsel %vm494, %v469, %v477
    %v507 = vsel %vm494, %v487, %v463
    %v508 = vsel %vm494, %v489, %v465
    %v509 = vsel %vm494, %v491, %v467
    %v510 = vsel %vm494, %v493, %v469
    %vm511 = vcmp.ge.s32.totalorder %v397, 32
    %vm512 = vcmp.ge.s32.totalorder %v398, 32
    %vm513 = vcmp.ge.s32.totalorder %v399, 32
    %vm514 = vcmp.ge.s32.totalorder %v400, 32
    %v515 = vsel %vm511, 1, 0
    %v516 = vsel %vm512, 1, 0
    %v517 = vsel %vm513, 1, 0
    %v518 = vsel %vm514, 1, 0
    %vm519 = vcmp.eq.s32.totalorder %v515, 1
    %vm520 = vcmp.eq.s32.totalorder %v516, 1
    %vm521 = vcmp.eq.s32.totalorder %v517, 1
    %vm522 = vcmp.eq.s32.totalorder %v518, 1
    %v523 = vsel %vm519, %v507, 0.0
    %v524 = vsel %vm520, %v503, 0.0
    %v525 = vsel %vm521, %v499, 0.0
    %v526 = vsel %vm522, %v495, 0.0
    %v527 = vsel %vm519, %v508, 0.0
    %v528 = vsel %vm520, %v504, 0.0
    %v529 = vsel %vm521, %v500, 0.0
    %v530 = vsel %vm522, %v496, 0.0
    %v531 = vsel %vm519, %v509, 0.0
    %v532 = vsel %vm520, %v505, 0.0
    %v533 = vsel %vm521, %v501, 0.0
    %v534 = vsel %vm522, %v497, 0.0
    %v535 = vsel %vm519, %v510, 0.0
    %v536 = vsel %vm520, %v506, 0.0
    %v537 = vsel %vm521, %v502, 0.0
    %v538 = vsel %vm522, %v498, 0.0
    %v539 = vld [vmem:[#allocation8] ss:$8 sm:$0xf]
    %v541 = vperm.slane %v539, 0
    %v542 = vperm.slane %v539, 1
    %v543 = vperm.slane %v539, 2
    %v544 = vperm.slane %v539, 3
    %v549 = vmul.f32 %v523, %v541
    %v550 = vmul.f32 %v524, %v542
    %v551 = vmul.f32 %v525, %v543
    %v552 = vmul.f32 %v526, %v544
    %v553 = vmul.f32 %v527, %v541
    %v554 = vmul.f32 %v528, %v542
    %v555 = vmul.f32 %v529, %v543
    %v556 = vmul.f32 %v530, %v544
    %v557 = vmul.f32 %v531, %v541
    %v558 = vmul.f32 %v532, %v542
    %v559 = vmul.f32 %v533, %v543
    %v560 = vmul.f32 %v534, %v544
    %v561 = vmul.f32 %v535, %v541
    %v562 = vmul.f32 %v536, %v542
    %v563 = vmul.f32 %v537, %v543
    %v564 = vmul.f32 %v538, %v544
    %v565 = vadd.f32 %v549, 0.0
    %v566 = vadd.f32 %v550, 0.0
    %v567 = vadd.f32 %v551, 0.0
    %v568 = vadd.f32 %v552, 0.0
    %v569 = vadd.f32 %v553, 0.0
    %v570 = vadd.f32 %v554, 0.0
    %v571 = vadd.f32 %v555, 0.0
    %v572 = vadd.f32 %v556, 0.0
    %v573 = vadd.f32 %v557, 0.0
    %v574 = vadd.f32 %v558, 0.0
    %v575 = vadd.f32 %v559, 0.0
    %v576 = vadd.f32 %v560, 0.0
    %v577 = vadd.f32 %v561, 0.0
    %v578 = vadd.f32 %v562, 0.0
    %v579 = vadd.f32 %v563, 0.0
    %v580 = vadd.f32 %v564, 0.0
    %s581 = scalar_lea.vmem [#allocation8], 1
    %v582 = vld [vmem:[%s581] ss:$8 sm:$0xf]
    %v584 = vperm.slane %v582, 0
    %v585 = vperm.slane %v582, 1
    %v586 = vperm.slane %v582, 2
    %v587 = vperm.slane %v582, 3
    %v592 = vmul.f32 %v446, %v584
    %v593 = vmul.f32 %v447, %v585
    %v594 = vmul.f32 %v448, %v586
    %v595 = vmul.f32 %v449, %v587
    %v596 = vmul.f32 %v450, %v584
    %v597 = vmul.f32 %v451, %v585
    %v598 = vmul.f32 %v452, %v586
    %v599 = vmul.f32 %v453, %v587
    %v600 = vmul.f32 %v454, %v584
    %v601 = vmul.f32 %v455, %v585
    %v602 = vmul.f32 %v456, %v586
    %v603 = vmul.f32 %v457, %v587
    %v604 = vmul.f32 %v458, %v584
    %v605 = vmul.f32 %v459, %v585
    %v606 = vmul.f32 %v460, %v586
    %v607 = vmul.f32 %v461, %v587
    %v608 = vadd.f32 %v565, %v592
    %v609 = vadd.f32 %v566, %v593
    %v610 = vadd.f32 %v567, %v594
    %v611 = vadd.f32 %v568, %v595
    %v612 = vadd.f32 %v569, %v596
    %v613 = vadd.f32 %v570, %v597
    %v614 = vadd.f32 %v571, %v598
    %v615 = vadd.f32 %v572, %v599
    %v616 = vadd.f32 %v573, %v600
    %v617 = vadd.f32 %v574, %v601
    %v618 = vadd.f32 %v575, %v602
    %v619 = vadd.f32 %v576, %v603
    %v620 = vadd.f32 %v577, %v604
    %v621 = vadd.f32 %v578, %v605
    %v622 = vadd.f32 %v579, %v606
    %v623 = vadd.f32 %v580, %v607
    %624 = vrot.lane.b32.xlu0 %v446, 96
    %v625 = vpop.permute.xlu0 %624
    %626 = vrot.lane.b32.xlu0 %v450, 96
    %v627 = vpop.permute.xlu0 %626
    %628 = vrot.lane.b32.xlu0 %v454, 96
    %v629 = vpop.permute.xlu0 %628
    %630 = vrot.lane.b32.xlu0 %v458, 96
    %v631 = vpop.permute.xlu0 %630
    %632 = vrot.lane.b32.xlu0 %v447, 96
    %v633 = vpop.permute.xlu0 %632
    %634 = vrot.lane.b32.xlu0 %v451, 96
    %v635 = vpop.permute.xlu0 %634
    %636 = vrot.lane.b32.xlu0 %v455, 96
    %v637 = vpop.permute.xlu0 %636
    %638 = vrot.lane.b32.xlu0 %v459, 96
    %v639 = vpop.permute.xlu0 %638
    %640 = vrot.lane.b32.xlu0 %v448, 96
    %v641 = vpop.permute.xlu0 %640
    %642 = vrot.lane.b32.xlu0 %v452, 96
    %v643 = vpop.permute.xlu0 %642
    %644 = vrot.lane.b32.xlu0 %v456, 96
    %v645 = vpop.permute.xlu0 %644
    %646 = vrot.lane.b32.xlu0 %v460, 96
    %v647 = vpop.permute.xlu0 %646
    %648 = vrot.lane.b32.xlu0 %v449, 96
    %v649 = vpop.permute.xlu0 %648
    %650 = vrot.lane.b32.xlu0 %v453, 96
    %v651 = vpop.permute.xlu0 %650
    %652 = vrot.lane.b32.xlu0 %v457, 96
    %v653 = vpop.permute.xlu0 %652
    %654 = vrot.lane.b32.xlu0 %v461, 96
    %v655 = vpop.permute.xlu0 %654
    %vm656 = vcmp.lt.s32.totalorder %v397, 96
    %v657 = vsel %vm656, %v641, %v649
    %v658 = vsel %vm656, %v643, %v651
    %v659 = vsel %vm656, %v645, %v653
    %v660 = vsel %vm656, %v647, %v655
    %v661 = vsel %vm656, %v633, %v641
    %v662 = vsel %vm656, %v635, %v643
    %v663 = vsel %vm656, %v637, %v645
    %v664 = vsel %vm656, %v639, %v647
    %v665 = vsel %vm656, %v625, %v633
    %v666 = vsel %vm656, %v627, %v635
    %v667 = vsel %vm656, %v629, %v637
    %v668 = vsel %vm656, %v631, %v639
    %v669 = vsel %vm656, %v649, %v625
    %v670 = vsel %vm656, %v651, %v627
    %v671 = vsel %vm656, %v653, %v629
    %v672 = vsel %vm656, %v655, %v631
    %vm673 = vcmp.lt.s32.totalorder %v397, 480
    %vm674 = vcmp.lt.s32.totalorder %v398, 480
    %vm675 = vcmp.lt.s32.totalorder %v399, 480
    %vm676 = vcmp.lt.s32.totalorder %v400, 480
    %v677 = vsel %vm673, 1, 0
    %v678 = vsel %vm674, 1, 0
    %v679 = vsel %vm675, 1, 0
    %v680 = vsel %vm676, 1, 0
    %vm681 = vcmp.eq.s32.totalorder %v677, 1
    %vm682 = vcmp.eq.s32.totalorder %v678, 1
    %vm683 = vcmp.eq.s32.totalorder %v679, 1
    %vm684 = vcmp.eq.s32.totalorder %v680, 1
    %v685 = vsel %vm681, %v665, 0.0
    %v686 = vsel %vm682, %v661, 0.0
    %v687 = vsel %vm683, %v657, 0.0
    %v688 = vsel %vm684, %v669, 0.0
    %v689 = vsel %vm681, %v666, 0.0
    %v690 = vsel %vm682, %v662, 0.0
    %v691 = vsel %vm683, %v658, 0.0
    %v692 = vsel %vm684, %v670, 0.0
    %v693 = vsel %vm681, %v667, 0.0
    %v694 = vsel %vm682, %v663, 0.0
    %v695 = vsel %vm683, %v659, 0.0
    %v696 = vsel %vm684, %v671, 0.0
    %v697 = vsel %vm681, %v668, 0.0
    %v698 = vsel %vm682, %v664, 0.0
    %v699 = vsel %vm683, %v660, 0.0
    %v700 = vsel %vm684, %v672, 0.0
    %s701 = scalar_lea.vmem [#allocation8], 2
    %v702 = vld [vmem:[%s701] ss:$8 sm:$0xf]
    %v704 = vperm.slane %v702, 0
    %v705 = vperm.slane %v702, 1
    %v706 = vperm.slane %v702, 2
    %v707 = vperm.slane %v702, 3
    %v712 = vmul.f32 %v685, %v704
    %v713 = vmul.f32 %v686, %v705
    %v714 = vmul.f32 %v687, %v706
    %v715 = vmul.f32 %v688, %v707
    %v716 = vmul.f32 %v689, %v704
    %v717 = vmul.f32 %v690, %v705
    %v718 = vmul.f32 %v691, %v706
    %v719 = vmul.f32 %v692, %v707
    %v720 = vmul.f32 %v693, %v704
    %v721 = vmul.f32 %v694, %v705
    %v722 = vmul.f32 %v695, %v706
    %v723 = vmul.f32 %v696, %v707
    %v724 = vmul.f32 %v697, %v704
    %v725 = vmul.f32 %v698, %v705
    %v726 = vmul.f32 %v699, %v706
    %v727 = vmul.f32 %v700, %v707
    %v728 = vadd.f32 %v608, %v712
    %v729 = vadd.f32 %v609, %v713
    %v730 = vadd.f32 %v610, %v714
    %v731 = vadd.f32 %v611, %v715
    %v732 = vadd.f32 %v612, %v716
    %v733 = vadd.f32 %v613, %v717
    %v734 = vadd.f32 %v614, %v718
    %v735 = vadd.f32 %v615, %v719
    %v736 = vadd.f32 %v616, %v720
    %v737 = vadd.f32 %v617, %v721
    %v738 = vadd.f32 %v618, %v722
    %v739 = vadd.f32 %v619, %v723
    %v740 = vadd.f32 %v620, %v724
    %v741 = vadd.f32 %v621, %v725
    %v742 = vadd.f32 %v622, %v726
    %v743 = vadd.f32 %v623, %v727
    %744 = vrot.lane.b32.xlu0 %v327, 32
    %v745 = vpop.permute.xlu0 %744
    %746 = vrot.lane.b32.xlu0 %v331, 32
    %v747 = vpop.permute.xlu0 %746
    %748 = vrot.lane.b32.xlu0 %v335, 32
    %v749 = vpop.permute.xlu0 %748
    %750 = vrot.lane.b32.xlu0 %v339, 32
    %v751 = vpop.permute.xlu0 %750
    %752 = vrot.lane.b32.xlu0 %v328, 32
    %v753 = vpop.permute.xlu0 %752
    %754 = vrot.lane.b32.xlu0 %v332, 32
    %v755 = vpop.permute.xlu0 %754
    %756 = vrot.lane.b32.xlu0 %v336, 32
    %v757 = vpop.permute.xlu0 %756
    %758 = vrot.lane.b32.xlu0 %v340, 32
    %v759 = vpop.permute.xlu0 %758
    %760 = vrot.lane.b32.xlu0 %v329, 32
    %v761 = vpop.permute.xlu0 %760
    %762 = vrot.lane.b32.xlu0 %v333, 32
    %v763 = vpop.permute.xlu0 %762
    %764 = vrot.lane.b32.xlu0 %v337, 32
    %v765 = vpop.permute.xlu0 %764
    %766 = vrot.lane.b32.xlu0 %v341, 32
    %v767 = vpop.permute.xlu0 %766
    %768 = vrot.lane.b32.xlu0 %v330, 32
    %v769 = vpop.permute.xlu0 %768
    %770 = vrot.lane.b32.xlu0 %v334, 32
    %v771 = vpop.permute.xlu0 %770
    %772 = vrot.lane.b32.xlu0 %v338, 32
    %v773 = vpop.permute.xlu0 %772
    %774 = vrot.lane.b32.xlu0 %v342, 32
    %v775 = vpop.permute.xlu0 %774
    %v776 = vsel %vm494, %v761, %v769
    %v777 = vsel %vm494, %v763, %v771
    %v778 = vsel %vm494, %v765, %v773
    %v779 = vsel %vm494, %v767, %v775
    %v780 = vsel %vm494, %v753, %v761
    %v781 = vsel %vm494, %v755, %v763
    %v782 = vsel %vm494, %v757, %v765
    %v783 = vsel %vm494, %v759, %v767
    %v784 = vsel %vm494, %v745, %v753
    %v785 = vsel %vm494, %v747, %v755
    %v786 = vsel %vm494, %v749, %v757
    %v787 = vsel %vm494, %v751, %v759
    %v788 = vsel %vm494, %v769, %v745
    %v789 = vsel %vm494, %v771, %v747
    %v790 = vsel %vm494, %v773, %v749
    %v791 = vsel %vm494, %v775, %v751
    %v792 = vsel %vm519, %v788, 0.0
    %v793 = vsel %vm520, %v784, 0.0
    %v794 = vsel %vm521, %v780, 0.0
    %v795 = vsel %vm522, %v776, 0.0
    %v796 = vsel %vm519, %v789, 0.0
    %v797 = vsel %vm520, %v785, 0.0
    %v798 = vsel %vm521, %v781, 0.0
    %v799 = vsel %vm522, %v777, 0.0
    %v800 = vsel %vm519, %v790, 0.0
    %v801 = vsel %vm520, %v786, 0.0
    %v802 = vsel %vm521, %v782, 0.0
    %v803 = vsel %vm522, %v778, 0.0
    %v804 = vsel %vm519, %v791, 0.0
    %v805 = vsel %vm520, %v787, 0.0
    %v806 = vsel %vm521, %v783, 0.0
    %v807 = vsel %vm522, %v779, 0.0
    %s808 = scalar_lea.vmem [#allocation8], 3
    %v809 = vld [vmem:[%s808] ss:$8 sm:$0xf]
    %v811 = vperm.slane %v809, 0
    %v812 = vperm.slane %v809, 1
    %v813 = vperm.slane %v809, 2
    %v814 = vperm.slane %v809, 3
    %v819 = vmul.f32 %v792, %v811
    %v820 = vmul.f32 %v793, %v812
    %v821 = vmul.f32 %v794, %v813
    %v822 = vmul.f32 %v795, %v814
    %v823 = vmul.f32 %v796, %v811
    %v824 = vmul.f32 %v797, %v812
    %v825 = vmul.f32 %v798, %v813
    %v826 = vmul.f32 %v799, %v814
    %v827 = vmul.f32 %v800, %v811
    %v828 = vmul.f32 %v801, %v812
    %v829 = vmul.f32 %v802, %v813
    %v830 = vmul.f32 %v803, %v814
    %v831 = vmul.f32 %v804, %v811
    %v832 = vmul.f32 %v805, %v812
    %v833 = vmul.f32 %v806, %v813
    %v834 = vmul.f32 %v807, %v814
    %v835 = vadd.f32 %v728, %v819
    %v836 = vadd.f32 %v729, %v820
    %v837 = vadd.f32 %v730, %v821
    %v838 = vadd.f32 %v731, %v822
    %v839 = vadd.f32 %v732, %v823
    %v840 = vadd.f32 %v733, %v824
    %v841 = vadd.f32 %v734, %v825
    %v842 = vadd.f32 %v735, %v826
    %v843 = vadd.f32 %v736, %v827
    %v844 = vadd.f32 %v737, %v828
    %v845 = vadd.f32 %v738, %v829
    %v846 = vadd.f32 %v739, %v830
    %v847 = vadd.f32 %v740, %v831
    %v848 = vadd.f32 %v741, %v832
    %v849 = vadd.f32 %v742, %v833
    %v850 = vadd.f32 %v743, %v834
    %s851 = scalar_lea.vmem [#allocation8], 4
    %v852 = vld [vmem:[%s851] ss:$8 sm:$0xf]
    %v854 = vperm.slane %v852, 0
    %v855 = vperm.slane %v852, 1
    %v856 = vperm.slane %v852, 2
    %v857 = vperm.slane %v852, 3
    %v862 = vmul.f32 %v327, %v854
    %v863 = vmul.f32 %v328, %v855
    %v864 = vmul.f32 %v329, %v856
    %v865 = vmul.f32 %v330, %v857
    %v866 = vmul.f32 %v331, %v854
    %v867 = vmul.f32 %v332, %v855
    %v868 = vmul.f32 %v333, %v856
    %v869 = vmul.f32 %v334, %v857
    %v870 = vmul.f32 %v335, %v854
    %v871 = vmul.f32 %v336, %v855
    %v872 = vmul.f32 %v337, %v856
    %v873 = vmul.f32 %v338, %v857
    %v874 = vmul.f32 %v339, %v854
    %v875 = vmul.f32 %v340, %v855
    %v876 = vmul.f32 %v341, %v856
    %v877 = vmul.f32 %v342, %v857
    %v878 = vadd.f32 %v835, %v862
    %v879 = vadd.f32 %v836, %v863
    %v880 = vadd.f32 %v837, %v864
    %v881 = vadd.f32 %v838, %v865
    %v882 = vadd.f32 %v839, %v866
    %v883 = vadd.f32 %v840, %v867
    %v884 = vadd.f32 %v841, %v868
    %v885 = vadd.f32 %v842, %v869
    %v886 = vadd.f32 %v843, %v870
    %v887 = vadd.f32 %v844, %v871
    %v888 = vadd.f32 %v845, %v872
    %v889 = vadd.f32 %v846, %v873
    %v890 = vadd.f32 %v847, %v874
    %v891 = vadd.f32 %v848, %v875
    %v892 = vadd.f32 %v849, %v876
    %v893 = vadd.f32 %v850, %v877
    %894 = vrot.lane.b32.xlu0 %v327, 96
    %v895 = vpop.permute.xlu0 %894
    %896 = vrot.lane.b32.xlu0 %v331, 96
    %v897 = vpop.permute.xlu0 %896
    %898 = vrot.lane.b32.xlu0 %v335, 96
    %v899 = vpop.permute.xlu0 %898
    %900 = vrot.lane.b32.xlu0 %v339, 96
    %v901 = vpop.permute.xlu0 %900
    %902 = vrot.lane.b32.xlu0 %v328, 96
    %v903 = vpop.permute.xlu0 %902
    %904 = vrot.lane.b32.xlu0 %v332, 96
    %v905 = vpop.permute.xlu0 %904
    %906 = vrot.lane.b32.xlu0 %v336, 96
    %v907 = vpop.permute.xlu0 %906
    %908 = vrot.lane.b32.xlu0 %v340, 96
    %v909 = vpop.permute.xlu0 %908
    %910 = vrot.lane.b32.xlu0 %v329, 96
    %v911 = vpop.permute.xlu0 %910
    %912 = vrot.lane.b32.xlu0 %v333, 96
    %v913 = vpop.permute.xlu0 %912
    %914 = vrot.lane.b32.xlu0 %v337, 96
    %v915 = vpop.permute.xlu0 %914
    %916 = vrot.lane.b32.xlu0 %v341, 96
    %v917 = vpop.permute.xlu0 %916
    %918 = vrot.lane.b32.xlu0 %v330, 96
    %v919 = vpop.permute.xlu0 %918
    %920 = vrot.lane.b32.xlu0 %v334, 96
    %v921 = vpop.permute.xlu0 %920
    %922 = vrot.lane.b32.xlu0 %v338, 96
    %v923 = vpop.permute.xlu0 %922
    %924 = vrot.lane.b32.xlu0 %v342, 96
    %v925 = vpop.permute.xlu0 %924
    %v926 = vsel %vm656, %v911, %v919
    %v927 = vsel %vm656, %v913, %v921
    %v928 = vsel %vm656, %v915, %v923
    %v929 = vsel %vm656, %v917, %v925
    %v930 = vsel %vm656, %v903, %v911
    %v931 = vsel %vm656, %v905, %v913
    %v932 = vsel %vm656, %v907, %v915
    %v933 = vsel %vm656, %v909, %v917
    %v934 = vsel %vm656, %v895, %v903
    %v935 = vsel %vm656, %v897, %v905
    %v936 = vsel %vm656, %v899, %v907
    %v937 = vsel %vm656, %v901, %v909
    %v938 = vsel %vm656, %v919, %v895
    %v939 = vsel %vm656, %v921, %v897
    %v940 = vsel %vm656, %v923, %v899
    %v941 = vsel %vm656, %v925, %v901
    %v942 = vsel %vm681, %v934, 0.0
    %v943 = vsel %vm682, %v930, 0.0
    %v944 = vsel %vm683, %v926, 0.0
    %v945 = vsel %vm684, %v938, 0.0
    %v946 = vsel %vm681, %v935, 0.0
    %v947 = vsel %vm682, %v931, 0.0
    %v948 = vsel %vm683, %v927, 0.0
    %v949 = vsel %vm684, %v939, 0.0
    %v950 = vsel %vm681, %v936, 0.0
    %v951 = vsel %vm682, %v932, 0.0
    %v952 = vsel %vm683, %v928, 0.0
    %v953 = vsel %vm684, %v940, 0.0
    %v954 = vsel %vm681, %v937, 0.0
    %v955 = vsel %vm682, %v933, 0.0
    %v956 = vsel %vm683, %v929, 0.0
    %v957 = vsel %vm684, %v941, 0.0
    %s958 = scalar_lea.vmem [#allocation8], 5
    %v959 = vld [vmem:[%s958] ss:$8 sm:$0xf]
    %v961 = vperm.slane %v959, 0
    %v962 = vperm.slane %v959, 1
    %v963 = vperm.slane %v959, 2
    %v964 = vperm.slane %v959, 3
    %v969 = vmul.f32 %v942, %v961
    %v970 = vmul.f32 %v943, %v962
    %v971 = vmul.f32 %v944, %v963
    %v972 = vmul.f32 %v945, %v964
    %v973 = vmul.f32 %v946, %v961
    %v974 = vmul.f32 %v947, %v962
    %v975 = vmul.f32 %v948, %v963
    %v976 = vmul.f32 %v949, %v964
    %v977 = vmul.f32 %v950, %v961
    %v978 = vmul.f32 %v951, %v962
    %v979 = vmul.f32 %v952, %v963
    %v980 = vmul.f32 %v953, %v964
    %v981 = vmul.f32 %v954, %v961
    %v982 = vmul.f32 %v955, %v962
    %v983 = vmul.f32 %v956, %v963
    %v984 = vmul.f32 %v957, %v964
    %v985 = vadd.f32 %v878, %v969
    %v986 = vadd.f32 %v879, %v970
    %v987 = vadd.f32 %v880, %v971
    %v988 = vadd.f32 %v881, %v972
    %v989 = vadd.f32 %v882, %v973
    %v990 = vadd.f32 %v883, %v974
    %v991 = vadd.f32 %v884, %v975
    %v992 = vadd.f32 %v885, %v976
    %v993 = vadd.f32 %v886, %v977
    %v994 = vadd.f32 %v887, %v978
    %v995 = vadd.f32 %v888, %v979
    %v996 = vadd.f32 %v889, %v980
    %v997 = vadd.f32 %v890, %v981
    %v998 = vadd.f32 %v891, %v982
    %v999 = vadd.f32 %v892, %v983
    %v1000 = vadd.f32 %v893, %v984
    %v1001 = vrot.slane %v327, 1
    %v1002 = vrot.slane %v328, 1
    %v1003 = vrot.slane %v329, 1
    %v1004 = vrot.slane %v330, 1
    %v1005 = vrot.slane %v331, 1
    %v1006 = vrot.slane %v332, 1
    %v1007 = vrot.slane %v333, 1
    %v1008 = vrot.slane %v334, 1
    %v1009 = vrot.slane %v335, 1
    %v1010 = vrot.slane %v336, 1
    %v1011 = vrot.slane %v337, 1
    %v1012 = vrot.slane %v338, 1
    %v1013 = vrot.slane %v339, 1
    %v1014 = vrot.slane %v340, 1
    %v1015 = vrot.slane %v341, 1
    %v1016 = vrot.slane %v342, 1
    %vm1017 = vcmp.lt.s32.totalorder %v344, 7
    %v1018 = vsel %vm1017, %v1009, %v1013
    %v1019 = vsel %vm1017, %v1010, %v1014
    %v1020 = vsel %vm1017, %v1011, %v1015
    %v1021 = vsel %vm1017, %v1012, %v1016
    %v1022 = vsel %vm1017, %v1005, %v1009
    %v1023 = vsel %vm1017, %v1006, %v1010
    %v1024 = vsel %vm1017, %v1007, %v1011
    %v1025 = vsel %vm1017, %v1008, %v1012
    %v1026 = vsel %vm1017, %v1001, %v1005
    %v1027 = vsel %vm1017, %v1002, %v1006
    %v1028 = vsel %vm1017, %v1003, %v1007
    %v1029 = vsel %vm1017, %v1004, %v1008
    %v1030 = vsel %vm1017, %v1013, %v1001
    %v1031 = vsel %vm1017, %v1014, %v1002
    %v1032 = vsel %vm1017, %v1015, %v1003
    %v1033 = vsel %vm1017, %v1016, %v1004
    %vm1034 = vcmp.lt.s32.totalorder %v392, 15
    %vm1035 = vcmp.lt.s32.totalorder %v393, 15
    %vm1036 = vcmp.lt.s32.totalorder %v394, 15
    %vm1037 = vcmp.lt.s32.totalorder %v395, 15
    %v1038 = vsel %vm1034, 1, 0
    %v1039 = vsel %vm1035, 1, 0
    %v1040 = vsel %vm1036, 1, 0
    %v1041 = vsel %vm1037, 1, 0
    %vm1042 = vcmp.eq.s32.totalorder %v1038, 1
    %vm1043 = vcmp.eq.s32.totalorder %v1039, 1
    %vm1044 = vcmp.eq.s32.totalorder %v1040, 1
    %vm1045 = vcmp.eq.s32.totalorder %v1041, 1
    %v1046 = vsel %vm1042, %v1026, 0.0
    %v1047 = vsel %vm1042, %v1027, 0.0
    %v1048 = vsel %vm1042, %v1028, 0.0
    %v1049 = vsel %vm1042, %v1029, 0.0
    %v1050 = vsel %vm1043, %v1022, 0.0
    %v1051 = vsel %vm1043, %v1023, 0.0
    %v1052 = vsel %vm1043, %v1024, 0.0
    %v1053 = vsel %vm1043, %v1025, 0.0
    %v1054 = vsel %vm1044, %v1018, 0.0
    %v1055 = vsel %vm1044, %v1019, 0.0
    %v1056 = vsel %vm1044, %v1020, 0.0
    %v1057 = vsel %vm1044, %v1021, 0.0
    %v1058 = vsel %vm1045, %v1030, 0.0
    %v1059 = vsel %vm1045, %v1031, 0.0
    %v1060 = vsel %vm1045, %v1032, 0.0
    %v1061 = vsel %vm1045, %v1033, 0.0
    %1062 = vrot.lane.b32.xlu0 %v1046, 32
    %v1063 = vpop.permute.xlu0 %1062
    %1064 = vrot.lane.b32.xlu0 %v1050, 32
    %v1065 = vpop.permute.xlu0 %1064
    %1066 = vrot.lane.b32.xlu0 %v1054, 32
    %v1067 = vpop.permute.xlu0 %1066
    %1068 = vrot.lane.b32.xlu0 %v1058, 32
    %v1069 = vpop.permute.xlu0 %1068
    %1070 = vrot.lane.b32.xlu0 %v1047, 32
    %v1071 = vpop.permute.xlu0 %1070
    %1072 = vrot.lane.b32.xlu0 %v1051, 32
    %v1073 = vpop.permute.xlu0 %1072
    %1074 = vrot.lane.b32.xlu0 %v1055, 32
    %v1075 = vpop.permute.xlu0 %1074
    %1076 = vrot.lane.b32.xlu0 %v1059, 32
    %v1077 = vpop.permute.xlu0 %1076
    %1078 = vrot.lane.b32.xlu0 %v1048, 32
    %v1079 = vpop.permute.xlu0 %1078
    %1080 = vrot.lane.b32.xlu0 %v1052, 32
    %v1081 = vpop.permute.xlu0 %1080
    %1082 = vrot.lane.b32.xlu0 %v1056, 32
    %v1083 = vpop.permute.xlu0 %1082
    %1084 = vrot.lane.b32.xlu0 %v1060, 32
    %v1085 = vpop.permute.xlu0 %1084
    %1086 = vrot.lane.b32.xlu0 %v1049, 32
    %v1087 = vpop.permute.xlu0 %1086
    %1088 = vrot.lane.b32.xlu0 %v1053, 32
    %v1089 = vpop.permute.xlu0 %1088
    %1090 = vrot.lane.b32.xlu0 %v1057, 32
    %v1091 = vpop.permute.xlu0 %1090
    %1092 = vrot.lane.b32.xlu0 %v1061, 32
    %v1093 = vpop.permute.xlu0 %1092
    %v1094 = vsel %vm494, %v1079, %v1087
    %v1095 = vsel %vm494, %v1081, %v1089
    %v1096 = vsel %vm494, %v1083, %v1091
    %v1097 = vsel %vm494, %v1085, %v1093
    %v1098 = vsel %vm494, %v1071, %v1079
    %v1099 = vsel %vm494, %v1073, %v1081
    %v1100 = vsel %vm494, %v1075, %v1083
    %v1101 = vsel %vm494, %v1077, %v1085
    %v1102 = vsel %vm494, %v1063, %v1071
    %v1103 = vsel %vm494, %v1065, %v1073
    %v1104 = vsel %vm494, %v1067, %v1075
    %v1105 = vsel %vm494, %v1069, %v1077
    %v1106 = vsel %vm494, %v1087, %v1063
    %v1107 = vsel %vm494, %v1089, %v1065
    %v1108 = vsel %vm494, %v1091, %v1067
    %v1109 = vsel %vm494, %v1093, %v1069
    %v1110 = vsel %vm519, %v1106, 0.0
    %v1111 = vsel %vm520, %v1102, 0.0
    %v1112 = vsel %vm521, %v1098, 0.0
    %v1113 = vsel %vm522, %v1094, 0.0
    %v1114 = vsel %vm519, %v1107, 0.0
    %v1115 = vsel %vm520, %v1103, 0.0
    %v1116 = vsel %vm521, %v1099, 0.0
    %v1117 = vsel %vm522, %v1095, 0.0
    %v1118 = vsel %vm519, %v1108, 0.0
    %v1119 = vsel %vm520, %v1104, 0.0
    %v1120 = vsel %vm521, %v1100, 0.0
    %v1121 = vsel %vm522, %v1096, 0.0
    %v1122 = vsel %vm519, %v1109, 0.0
    %v1123 = vsel %vm520, %v1105, 0.0
    %v1124 = vsel %vm521, %v1101, 0.0
    %v1125 = vsel %vm522, %v1097, 0.0
    %s1126 = scalar_lea.vmem [#allocation8], 6
    %v1127 = vld [vmem:[%s1126] ss:$8 sm:$0xf]
    %v1129 = vperm.slane %v1127, 0
    %v1130 = vperm.slane %v1127, 1
    %v1131 = vperm.slane %v1127, 2
    %v1132 = vperm.slane %v1127, 3
    %v1137 = vmul.f32 %v1110, %v1129
    %v1138 = vmul.f32 %v1111, %v1130
    %v1139 = vmul.f32 %v1112, %v1131
    %v1140 = vmul.f32 %v1113, %v1132
    %v1141 = vmul.f32 %v1114, %v1129
    %v1142 = vmul.f32 %v1115, %v1130
    %v1143 = vmul.f32 %v1116, %v1131
    %v1144 = vmul.f32 %v1117, %v1132
    %v1145 = vmul.f32 %v1118, %v1129
    %v1146 = vmul.f32 %v1119, %v1130
    %v1147 = vmul.f32 %v1120, %v1131
    %v1148 = vmul.f32 %v1121, %v1132
    %v1149 = vmul.f32 %v1122, %v1129
    %v1150 = vmul.f32 %v1123, %v1130
    %v1151 = vmul.f32 %v1124, %v1131
    %v1152 = vmul.f32 %v1125, %v1132
    %v1153 = vadd.f32 %v985, %v1137
    %v1154 = vadd.f32 %v986, %v1138
    %v1155 = vadd.f32 %v987, %v1139
    %v1156 = vadd.f32 %v988, %v1140
    %v1157 = vadd.f32 %v989, %v1141
    %v1158 = vadd.f32 %v990, %v1142
    %v1159 = vadd.f32 %v991, %v1143
    %v1160 = vadd.f32 %v992, %v1144
    %v1161 = vadd.f32 %v993, %v1145
    %v1162 = vadd.f32 %v994, %v1146
    %v1163 = vadd.f32 %v995, %v1147
    %v1164 = vadd.f32 %v996, %v1148
    %v1165 = vadd.f32 %v997, %v1149
    %v1166 = vadd.f32 %v998, %v1150
    %v1167 = vadd.f32 %v999, %v1151
    %v1168 = vadd.f32 %v1000, %v1152
    %s1169 = scalar_lea.vmem [#allocation8], 7
    %v1170 = vld [vmem:[%s1169] ss:$8 sm:$0xf]
    %v1172 = vperm.slane %v1170, 0
    %v1173 = vperm.slane %v1170, 1
    %v1174 = vperm.slane %v1170, 2
    %v1175 = vperm.slane %v1170, 3
    %v1180 = vmul.f32 %v1046, %v1172
    %v1181 = vmul.f32 %v1047, %v1173
    %v1182 = vmul.f32 %v1048, %v1174
    %v1183 = vmul.f32 %v1049, %v1175
    %v1184 = vmul.f32 %v1050, %v1172
    %v1185 = vmul.f32 %v1051, %v1173
    %v1186 = vmul.f32 %v1052, %v1174
    %v1187 = vmul.f32 %v1053, %v1175
    %v1188 = vmul.f32 %v1054, %v1172
    %v1189 = vmul.f32 %v1055, %v1173
    %v1190 = vmul.f32 %v1056, %v1174
    %v1191 = vmul.f32 %v1057, %v1175
    %v1192 = vmul.f32 %v1058, %v1172
    %v1193 = vmul.f32 %v1059, %v1173
    %v1194 = vmul.f32 %v1060, %v1174
    %v1195 = vmul.f32 %v1061, %v1175
    %v1196 = vadd.f32 %v1153, %v1180
    %v1197 = vadd.f32 %v1154, %v1181
    %v1198 = vadd.f32 %v1155, %v1182
    %v1199 = vadd.f32 %v1156, %v1183
    %v1200 = vadd.f32 %v1157, %v1184
    %v1201 = vadd.f32 %v1158, %v1185
    %v1202 = vadd.f32 %v1159, %v1186
    %v1203 = vadd.f32 %v1160, %v1187
    %v1204 = vadd.f32 %v1161, %v1188
    %v1205 = vadd.f32 %v1162, %v1189
    %v1206 = vadd.f32 %v1163, %v1190
    %v1207 = vadd.f32 %v1164, %v1191
    %v1208 = vadd.f32 %v1165, %v1192
    %v1209 = vadd.f32 %v1166, %v1193
    %v1210 = vadd.f32 %v1167, %v1194
    %v1211 = vadd.f32 %v1168, %v1195
    %1212 = vrot.lane.b32.xlu0 %v1046, 96
    %v1213 = vpop.permute.xlu0 %1212
    %1214 = vrot.lane.b32.xlu0 %v1050, 96
    %v1215 = vpop.permute.xlu0 %1214
    %1216 = vrot.lane.b32.xlu0 %v1054, 96
    %v1217 = vpop.permute.xlu0 %1216
    %1218 = vrot.lane.b32.xlu0 %v1058, 96
    %v1219 = vpop.permute.xlu0 %1218
    %1220 = vrot.lane.b32.xlu0 %v1047, 96
    %v1221 = vpop.permute.xlu0 %1220
    %1222 = vrot.lane.b32.xlu0 %v1051, 96
    %v1223 = vpop.permute.xlu0 %1222
    %1224 = vrot.lane.b32.xlu0 %v1055, 96
    %v1225 = vpop.permute.xlu0 %1224
    %1226 = vrot.lane.b32.xlu0 %v1059, 96
    %v1227 = vpop.permute.xlu0 %1226
    %1228 = vrot.lane.b32.xlu0 %v1048, 96
    %v1229 = vpop.permute.xlu0 %1228
    %1230 = vrot.lane.b32.xlu0 %v1052, 96
    %v1231 = vpop.permute.xlu0 %1230
    %1232 = vrot.lane.b32.xlu0 %v1056, 96
    %v1233 = vpop.permute.xlu0 %1232
    %1234 = vrot.lane.b32.xlu0 %v1060, 96
    %v1235 = vpop.permute.xlu0 %1234
    %1236 = vrot.lane.b32.xlu0 %v1049, 96
    %v1237 = vpop.permute.xlu0 %1236
    %1238 = vrot.lane.b32.xlu0 %v1053, 96
    %v1239 = vpop.permute.xlu0 %1238
    %1240 = vrot.lane.b32.xlu0 %v1057, 96
    %v1241 = vpop.permute.xlu0 %1240
    %1242 = vrot.lane.b32.xlu0 %v1061, 96
    %v1243 = vpop.permute.xlu0 %1242
    %v1244 = vsel %vm656, %v1229, %v1237
    %v1245 = vsel %vm656, %v1231, %v1239
    %v1246 = vsel %vm656, %v1233, %v1241
    %v1247 = vsel %vm656, %v1235, %v1243
    %v1248 = vsel %vm656, %v1221, %v1229
    %v1249 = vsel %vm656, %v1223, %v1231
    %v1250 = vsel %vm656, %v1225, %v1233
    %v1251 = vsel %vm656, %v1227, %v1235
    %v1252 = vsel %vm656, %v1213, %v1221
    %v1253 = vsel %vm656, %v1215, %v1223
    %v1254 = vsel %vm656, %v1217, %v1225
    %v1255 = vsel %vm656, %v1219, %v1227
    %v1256 = vsel %vm656, %v1237, %v1213
    %v1257 = vsel %vm656, %v1239, %v1215
    %v1258 = vsel %vm656, %v1241, %v1217
    %v1259 = vsel %vm656, %v1243, %v1219
    %v1260 = vsel %vm681, %v1252, 0.0
    %v1261 = vsel %vm682, %v1248, 0.0
    %v1262 = vsel %vm683, %v1244, 0.0
    %v1263 = vsel %vm684, %v1256, 0.0
    %v1264 = vsel %vm681, %v1253, 0.0
    %v1265 = vsel %vm682, %v1249, 0.0
    %v1266 = vsel %vm683, %v1245, 0.0
    %v1267 = vsel %vm684, %v1257, 0.0
    %v1268 = vsel %vm681, %v1254, 0.0
    %v1269 = vsel %vm682, %v1250, 0.0
    %v1270 = vsel %vm683, %v1246, 0.0
    %v1271 = vsel %vm684, %v1258, 0.0
    %v1272 = vsel %vm681, %v1255, 0.0
    %v1273 = vsel %vm682, %v1251, 0.0
    %v1274 = vsel %vm683, %v1247, 0.0
    %v1275 = vsel %vm684, %v1259, 0.0
    %s1276 = scalar_lea.vmem [#allocation8], 32
    %v1277 = vld [vmem:[%s1276] ss:$8 sm:$0xf]
    %v1279 = vperm.slane %v1277, 0
    %v1280 = vperm.slane %v1277, 1
    %v1281 = vperm.slane %v1277, 2
    %v1282 = vperm.slane %v1277, 3
    %v1287 = vmul.f32 %v1260, %v1279
    %v1288 = vmul.f32 %v1261, %v1280
    %v1289 = vmul.f32 %v1262, %v1281
    %v1290 = vmul.f32 %v1263, %v1282
    %v1291 = vmul.f32 %v1264, %v1279
    %v1292 = vmul.f32 %v1265, %v1280
    %v1293 = vmul.f32 %v1266, %v1281
    %v1294 = vmul.f32 %v1267, %v1282
    %v1295 = vmul.f32 %v1268, %v1279
    %v1296 = vmul.f32 %v1269, %v1280
    %v1297 = vmul.f32 %v1270, %v1281
    %v1298 = vmul.f32 %v1271, %v1282
    %v1299 = vmul.f32 %v1272, %v1279
    %v1300 = vmul.f32 %v1273, %v1280
    %v1301 = vmul.f32 %v1274, %v1281
    %v1302 = vmul.f32 %v1275, %v1282
    %v1303 = vadd.f32 %v1196, %v1287
    %v1304 = vadd.f32 %v1197, %v1288
    %v1305 = vadd.f32 %v1198, %v1289
    %v1306 = vadd.f32 %v1199, %v1290
    %v1307 = vadd.f32 %v1200, %v1291
    %v1308 = vadd.f32 %v1201, %v1292
    %v1309 = vadd.f32 %v1202, %v1293
    %v1310 = vadd.f32 %v1203, %v1294
    %v1311 = vadd.f32 %v1204, %v1295
    %v1312 = vadd.f32 %v1205, %v1296
    %v1313 = vadd.f32 %v1206, %v1297
    %v1314 = vadd.f32 %v1207, %v1298
    %v1315 = vadd.f32 %v1208, %v1299
    %v1316 = vadd.f32 %v1209, %v1300
    %v1317 = vadd.f32 %v1210, %v1301
    %v1318 = vadd.f32 %v1211, %v1302
    %v1319 = vld [vmem:[#allocation10] sm:$0xf]
    %v1321 = vperm.slane %v1319, 0
    %v1322 = vperm.slane %v1319, 1
    %v1323 = vperm.slane %v1319, 2
    %v1324 = vperm.slane %v1319, 3
    %v1329 = vadd.f32 %v1303, %v1321
    %v1330 = vadd.f32 %v1304, %v1322
    %v1331 = vadd.f32 %v1305, %v1323
    %v1332 = vadd.f32 %v1306, %v1324
    %v1333 = vadd.f32 %v1307, %v1321
    %v1334 = vadd.f32 %v1308, %v1322
    %v1335 = vadd.f32 %v1309, %v1323
    %v1336 = vadd.f32 %v1310, %v1324
    %v1337 = vadd.f32 %v1311, %v1321
    %v1338 = vadd.f32 %v1312, %v1322
    %v1339 = vadd.f32 %v1313, %v1323
    %v1340 = vadd.f32 %v1314, %v1324
    %v1341 = vadd.f32 %v1315, %v1321
    %v1342 = vadd.f32 %v1316, %v1322
    %v1343 = vadd.f32 %v1317, %v1323
    %v1344 = vadd.f32 %v1318, %v1324
    %v1345 = vmax.f32 %v1329, 0.0
    %v1346 = vmax.f32 %v1330, 0.0
    %v1347 = vmax.f32 %v1331, 0.0
    %v1348 = vmax.f32 %v1332, 0.0
    %v1349 = vmax.f32 %v1333, 0.0
    %v1350 = vmax.f32 %v1334, 0.0
    %v1351 = vmax.f32 %v1335, 0.0
    %v1352 = vmax.f32 %v1336, 0.0
    %v1353 = vmax.f32 %v1337, 0.0
    %v1354 = vmax.f32 %v1338, 0.0
    %v1355 = vmax.f32 %v1339, 0.0
    %v1356 = vmax.f32 %v1340, 0.0
    %v1357 = vmax.f32 %v1341, 0.0
    %v1358 = vmax.f32 %v1342, 0.0
    %v1359 = vmax.f32 %v1343, 0.0
    %v1360 = vmax.f32 %v1344, 0.0
    %v1361 = vmin.f32 %v1345, 6.0
    %v1362 = vmin.f32 %v1346, 6.0
    %v1363 = vmin.f32 %v1347, 6.0
    %v1364 = vmin.f32 %v1348, 6.0
    %v1365 = vmin.f32 %v1349, 6.0
    %v1366 = vmin.f32 %v1350, 6.0
    %v1367 = vmin.f32 %v1351, 6.0
    %v1368 = vmin.f32 %v1352, 6.0
    %v1369 = vmin.f32 %v1353, 6.0
    %v1370 = vmin.f32 %v1354, 6.0
    %v1371 = vmin.f32 %v1355, 6.0
    %v1372 = vmin.f32 %v1356, 6.0
    %v1373 = vmin.f32 %v1357, 6.0
    %v1374 = vmin.f32 %v1358, 6.0
    %v1375 = vmin.f32 %v1359, 6.0
    %v1376 = vmin.f32 %v1360, 6.0
    %v1377 = vld [vmem:[#allocation11] sm:$0xff]
    %v1378 = vld [vmem:[#allocation11 + $0x8] sm:$0xff]
    %v1379 = vld [vmem:[#allocation11 + $0x10] sm:$0xff]
    %v1380 = vld [vmem:[#allocation11 + $0x18] sm:$0xff]
    %v1381 = vld [vmem:[#allocation11 + $0x20] sm:$0xff]
    %v1382 = vld [vmem:[#allocation11 + $0x28] sm:$0xff]
    %v1383 = vld [vmem:[#allocation11 + $0x30] sm:$0xff]
    %v1384 = vld [vmem:[#allocation11 + $0x38] sm:$0xff]
    %v1385 = vld [vmem:[#allocation11 + $0x40] sm:$0xff]
    %v1386 = vld [vmem:[#allocation11 + $0x48] sm:$0xff]
    %v1387 = vld [vmem:[#allocation11 + $0x50] sm:$0xff]
    %v1388 = vld [vmem:[#allocation11 + $0x58] sm:$0xff]
    %v1389 = vld [vmem:[#allocation11 + $0x60] sm:$0xff]
    %v1390 = vld [vmem:[#allocation11 + $0x68] sm:$0xff]
    %v1391 = vld [vmem:[#allocation11 + $0x70] sm:$0xff]
    %v1392 = vld [vmem:[#allocation11 + $0x78] sm:$0xff]
    %v1393 = vld [vmem:[#allocation11 + $0x80] sm:$0xff]
    %v1394 = vld [vmem:[#allocation11 + $0x88] sm:$0xff]
    %v1395 = vld [vmem:[#allocation11 + $0x90] sm:$0xff]
    %v1396 = vld [vmem:[#allocation11 + $0x98] sm:$0xff]
    %v1397 = vld [vmem:[#allocation11 + $0xa0] sm:$0xff]
    %v1398 = vld [vmem:[#allocation11 + $0xa8] sm:$0xff]
    %v1399 = vld [vmem:[#allocation11 + $0xb0] sm:$0xff]
    %v1400 = vld [vmem:[#allocation11 + $0xb8] sm:$0xff]
    %v1401 = vld [vmem:[#allocation11 + $0xc0] sm:$0xff]
    %v1402 = vld [vmem:[#allocation11 + $0xc8] sm:$0xff]
    %v1403 = vld [vmem:[#allocation11 + $0xd0] sm:$0xff]
    %v1404 = vld [vmem:[#allocation11 + $0xd8] sm:$0xff]
    %v1405 = vld [vmem:[#allocation11 + $0xe0] sm:$0xff]
    %v1406 = vld [vmem:[#allocation11 + $0xe8] sm:$0xff]
    %v1407 = vld [vmem:[#allocation11 + $0xf0] sm:$0xff]
    %v1408 = vld [vmem:[#allocation11 + $0xf8] sm:$0xff]
    %v1409 = vld [vmem:[#allocation11 + $0x100] sm:$0xff]
    %v1410 = vld [vmem:[#allocation11 + $0x108] sm:$0xff]
    %v1411 = vld [vmem:[#allocation11 + $0x110] sm:$0xff]
    %v1412 = vld [vmem:[#allocation11 + $0x118] sm:$0xff]
    %v1413 = vld [vmem:[#allocation11 + $0x120] sm:$0xff]
    %v1414 = vld [vmem:[#allocation11 + $0x128] sm:$0xff]
    %v1415 = vld [vmem:[#allocation11 + $0x130] sm:$0xff]
    %v1416 = vld [vmem:[#allocation11 + $0x138] sm:$0xff]
    %v1417 = vld [vmem:[#allocation11 + $0x140] sm:$0xff]
    %v1418 = vld [vmem:[#allocation11 + $0x148] sm:$0xff]
    %v1419 = vld [vmem:[#allocation11 + $0x150] sm:$0xff]
    %v1420 = vld [vmem:[#allocation11 + $0x158] sm:$0xff]
    %v1421 = vld [vmem:[#allocation11 + $0x160] sm:$0xff]
    %v1422 = vld [vmem:[#allocation11 + $0x168] sm:$0xff]
    %v1423 = vld [vmem:[#allocation11 + $0x170] sm:$0xff]
    %v1424 = vld [vmem:[#allocation11 + $0x178] sm:$0xff]
    %v1425 = vld [vmem:[#allocation11 + $0x180] sm:$0xff]
    %v1426 = vld [vmem:[#allocation11 + $0x188] sm:$0xff]
    %v1427 = vld [vmem:[#allocation11 + $0x190] sm:$0xff]
    %v1428 = vld [vmem:[#allocation11 + $0x198] sm:$0xff]
    %v1429 = vld [vmem:[#allocation11 + $0x1a0] sm:$0xff]
    %v1430 = vld [vmem:[#allocation11 + $0x1a8] sm:$0xff]
    %v1431 = vld [vmem:[#allocation11 + $0x1b0] sm:$0xff]
    %v1432 = vld [vmem:[#allocation11 + $0x1b8] sm:$0xff]
    %v1433 = vld [vmem:[#allocation11 + $0x1c0] sm:$0xff]
    %v1434 = vld [vmem:[#allocation11 + $0x1c8] sm:$0xff]
    %v1435 = vld [vmem:[#allocation11 + $0x1d0] sm:$0xff]
    %v1436 = vld [vmem:[#allocation11 + $0x1d8] sm:$0xff]
    %v1437 = vld [vmem:[#allocation11 + $0x1e0] sm:$0xff]
    %v1438 = vld [vmem:[#allocation11 + $0x1e8] sm:$0xff]
    %v1439 = vld [vmem:[#allocation11 + $0x1f0] sm:$0xff]
    %v1440 = vld [vmem:[#allocation11 + $0x1f8] sm:$0xff]
    %v1441 = vld [vmem:[%s6] sm:$0x1]
    %v1443 = vperm.slane %v1441, 0
    %1445 = vmatpush.msra.mxu0 %v1392
    %1446 = vmatpush.msra.mxu0 %v1391
    %1447 = vmatpush.msra.mxu0 %v1390
    %1448 = vmatpush.msra.mxu0 %v1389
    %1449 = vmatpush.msra.mxu0 %v1388
    %1450 = vmatpush.msra.mxu0 %v1387
    %1451 = vmatpush.msra.mxu0 %v1386
    %1452 = vmatpush.msra.mxu0 %v1385
    %1453 = vmatpush.msra.mxu0 %v1384
    %1454 = vmatpush.msra.mxu0 %v1383
    %1455 = vmatpush.msra.mxu0 %v1382
    %1456 = vmatpush.msra.mxu0 %v1381
    %1457 = vmatpush.msra.mxu0 %v1380
    %1458 = vmatpush.msra.mxu0 %v1379
    %1459 = vmatpush.msra.mxu0 %v1378
    %1460 = vmatpush.msra.mxu0 %v1377
    %1461 = vmatmul.f32.gmra.mxu0 %v1361
    %v1462 = vpop.f32.mrf.mxu0
    %v1463 = vadd.f32 %v1443, %v1462
    %1464 = vmatmul.f32.gmra.mxu0 %v1365
    %v1465 = vpop.f32.mrf.mxu0
    %v1466 = vadd.f32 %v1443, %v1465
    %1467 = vmatmul.f32.gmra.mxu0 %v1369
    %v1468 = vpop.f32.mrf.mxu0
    %v1469 = vadd.f32 %v1443, %v1468
    %1470 = vmatmul.f32.gmra.mxu0 %v1373
    %v1471 = vpop.f32.mrf.mxu0
    %v1472 = vadd.f32 %v1443, %v1471
    %1473 = vdwg.mxu0
    %1474 = vmatpush.msra.mxu0 %v1408
    %1475 = vmatpush.msra.mxu0 %v1407
    %1476 = vmatpush.msra.mxu0 %v1406
    %1477 = vmatpush.msra.mxu0 %v1405
    %1478 = vmatpush.msra.mxu0 %v1404
    %1479 = vmatpush.msra.mxu0 %v1403
    %1480 = vmatpush.msra.mxu0 %v1402
    %1481 = vmatpush.msra.mxu0 %v1401
    %1482 = vmatpush.msra.mxu0 %v1400
    %1483 = vmatpush.msra.mxu0 %v1399
    %1484 = vmatpush.msra.mxu0 %v1398
    %1485 = vmatpush.msra.mxu0 %v1397
    %1486 = vmatpush.msra.mxu0 %v1396
    %1487 = vmatpush.msra.mxu0 %v1395
    %1488 = vmatpush.msra.mxu0 %v1394
    %1489 = vmatpush.msra.mxu0 %v1393
    %1490 = vmatmul.f32.gmra.mxu0 %v1362
    %v1491 = vpop.f32.mrf.mxu0
    %v1492 = vadd.f32 %v1463, %v1491
    %1493 = vmatmul.f32.gmra.mxu0 %v1366
    %v1494 = vpop.f32.mrf.mxu0
    %v1495 = vadd.f32 %v1466, %v1494
    %1496 = vmatmul.f32.gmra.mxu0 %v1370
    %v1497 = vpop.f32.mrf.mxu0
    %v1498 = vadd.f32 %v1469, %v1497
    %1499 = vmatmul.f32.gmra.mxu0 %v1374
    %v1500 = vpop.f32.mrf.mxu0
    %v1501 = vadd.f32 %v1472, %v1500
    %1502 = vdwg.mxu0
    %1503 = vmatpush.msra.mxu0 %v1424
    %1504 = vmatpush.msra.mxu0 %v1423
    %1505 = vmatpush.msra.mxu0 %v1422
    %1506 = vmatpush.msra.mxu0 %v1421
    %1507 = vmatpush.msra.mxu0 %v1420
    %1508 = vmatpush.msra.mxu0 %v1419
    %1509 = vmatpush.msra.mxu0 %v1418
    %1510 = vmatpush.msra.mxu0 %v1417
    %1511 = vmatpush.msra.mxu0 %v1416
    %1512 = vmatpush.msra.mxu0 %v1415
    %1513 = vmatpush.msra.mxu0 %v1414
    %1514 = vmatpush.msra.mxu0 %v1413
    %1515 = vmatpush.msra.mxu0 %v1412
    %1516 = vmatpush.msra.mxu0 %v1411
    %1517 = vmatpush.msra.mxu0 %v1410
    %1518 = vmatpush.msra.mxu0 %v1409
    %1519 = vmatmul.f32.gmra.mxu0 %v1363
    %v1520 = vpop.f32.mrf.mxu0
    %v1521 = vadd.f32 %v1492, %v1520
    %1522 = vmatmul.f32.gmra.mxu0 %v1367
    %v1523 = vpop.f32.mrf.mxu0
    %v1524 = vadd.f32 %v1495, %v1523
    %1525 = vmatmul.f32.gmra.mxu0 %v1371
    %v1526 = vpop.f32.mrf.mxu0
    %v1527 = vadd.f32 %v1498, %v1526
    %1528 = vmatmul.f32.gmra.mxu0 %v1375
    %v1529 = vpop.f32.mrf.mxu0
    %v1530 = vadd.f32 %v1501, %v1529
    %1531 = vdwg.mxu0
    %1532 = vmatpush.msra.mxu0 %v1440
    %1533 = vmatpush.msra.mxu0 %v1439
    %1534 = vmatpush.msra.mxu0 %v1438
    %1535 = vmatpush.msra.mxu0 %v1437
    %1536 = vmatpush.msra.mxu0 %v1436
    %1537 = vmatpush.msra.mxu0 %v1435
    %1538 = vmatpush.msra.mxu0 %v1434
    %1539 = vmatpush.msra.mxu0 %v1433
    %1540 = vmatpush.msra.mxu0 %v1432
    %1541 = vmatpush.msra.mxu0 %v1431
    %1542 = vmatpush.msra.mxu0 %v1430
    %1543 = vmatpush.msra.mxu0 %v1429
    %1544 = vmatpush.msra.mxu0 %v1428
    %1545 = vmatpush.msra.mxu0 %v1427
    %1546 = vmatpush.msra.mxu0 %v1426
    %1547 = vmatpush.msra.mxu0 %v1425
    %1548 = vmatmul.f32.gmra.mxu0 %v1364
    %v1549 = vpop.f32.mrf.mxu0
    %v1550 = vadd.f32 %v1521, %v1549
    %1551 = vmatmul.f32.gmra.mxu0 %v1368
    %v1552 = vpop.f32.mrf.mxu0
    %v1553 = vadd.f32 %v1524, %v1552
    %1554 = vmatmul.f32.gmra.mxu0 %v1372
    %v1555 = vpop.f32.mrf.mxu0
    %v1556 = vadd.f32 %v1527, %v1555
    %1557 = vmatmul.f32.gmra.mxu0 %v1376
    %v1558 = vpop.f32.mrf.mxu0
    %v1559 = vadd.f32 %v1530, %v1558
    %1560 = vdwg.mxu0
    %v1561 = vadd.f32 %v1550, %v117
    %v1562 = vadd.f32 %v1553, %v118
    %v1563 = vadd.f32 %v1556, %v119
    %v1564 = vadd.f32 %v1559, %v120
    %1565 = vst [vmem:[#allocation13] sm:$0xff] %v1561
    %1566 = vst [vmem:[#allocation13 + $0x8] sm:$0xff] %v1562
    %1567 = vst [vmem:[#allocation13 + $0x10] sm:$0xff] %v1563
    %1568 = vst [vmem:[#allocation13 + $0x18] sm:$0xff] %v1564
    // Predicated region
    $region54: #{tpu_custom_call.1} parent=1 // pred_check
      _
    $region55: #{tpu_custom_call.1} parent=1 // pred_check_branch
      %1570 = sbr.rel (0) target = $region57
    $region56: #{tpu_custom_call.1} parent=1 // pred_region
      %1572 = vsyncadd [#allocation4], 0
      %s1573 = sshll.u32 [#allocation13], 4
      %s1574 = int_to_ptr.vmem [resolvable:$true] %s1573
      %s1575 = sshll.u32 %s7, 4
      %s1576 = int_to_ptr.hbm [resolvable:$true] %s1575
      %1581 = dma.vmem_to_hbm [thread:$0]  %s1574, 512, %s1576, [#allocation4], 128, 128, 8
    $region57: #{tpu_custom_call.1} parent=1 // pred_fallthru
      _
    // Predicated region
    $region58: #{tpu_custom_call.1} parent=1 // pred_check
      _
    $region59: #{tpu_custom_call.1} parent=1 // pred_check_branch
      %1583 = sbr.rel (0) target = $region61
    $region60: #{tpu_custom_call.1} parent=1 // pred_region
      %1585 = dma.done [#allocation4], 512
    $region61: #{tpu_custom_call.1} parent=1 // pred_fallthru
      _
    %1586 = vsyncpa [#allocation3], 1
    %1587 = vsyncpa [#allocation6], 1
    %1588 = vsyncpa [#allocation9], 1
    %1589 = vsyncpa [#allocation12], 1
    %1590 = vsyncpa [#allocation4], 1

</llo_original>
